<compile_context>
chip_gen: v5e
topology: v5e:2x2
jax: 0.10.0
libtpu: 0.0.40
codegen_flags: <defaults>
</compile_context>

<pallas_src>
import functools

import jax
import jax.numpy as jnp
from jax import lax
from jax.experimental import pallas as pl
from jax.experimental.pallas import tpu as pltpu


# ---------------------------------------------------------------------------
# Kernel: whole decoder forward in one invocation.
# ---------------------------------------------------------------------------
def gru_decoder_kernel(
    x_ref,                    # (T*Bp, E)     inputs for all timesteps (batch padded)
    h0_ref,                   # (Bp, Hp)      initial hidden (hidden padded to 128)
    wi_ref,                   # (E, 3*Hp)     input->hidden weights, per-gate 128-lane slabs
    wh_ref,                   # (Hp, 3*Hp)    hidden->hidden weights, per-gate slabs
    bi_ref,                   # (1, 3*Hp)     hoisted biases (b_i + b_h for r,z; b_in for n)
    bhn_ref,                  # (1, Hp)       hidden-side bias of the n gate
    wout_ref,                 # (Hp, Vp)      output Linear weight (transposed, padded)
    bout_ref,                 # (1, Vp)       output Linear bias (padded)
    logits_ref,               # (T*Bp, Vp)    output logits (lane dense)
    hfin_ref,                 # (Bp, Hp)      final hidden
    gi_scratch,               # VMEM (T*Bp, 3*Hp)
    rnn_scratch,              # VMEM (T*Bp, Hp)
    *, seq_len, batch, hidden_pad, unroll,
):
    T, B, Hp = seq_len, batch, hidden_pad

    # ---- Hoisted input projection: one MXU pass for all timesteps ---------
    # r/z hidden-side biases are already folded into bi, so the recurrence
    # body has no per-step (1,3Hp)->(B,3Hp) bias broadcast.
    gi_scratch[...] = (
        jnp.dot(x_ref[...], wi_ref[...], preferred_element_type=jnp.float32)
        + bi_ref[...])

    wh = wh_ref[...]                                      # loaded once
    bhn = jnp.broadcast_to(bhn_ref[...], (B, Hp))         # broadcast once (hoisted)

    # ---- Serial recurrence: 1 fused hidden matmul + elementwise per step --
    # PyTorch GRU gate equations (gate order r, z, n):
    #   r = sigmoid(W_ir x + b_ir + W_hr h + b_hr)
    #   z = sigmoid(W_iz x + b_iz + W_hz h + b_hz)
    #   n = tanh  (W_in x + b_in + r * (W_hn h + b_hn))
    #   h = (1 - z) * n + z * h
    def step(t, h_prev):
        off = pl.multiple_of(t * B, B)                    # B is a multiple of 8
        gi_t = gi_scratch[pl.ds(off, B), :]               # (B, 3*Hp), lane aligned
        gh = jnp.dot(h_prev, wh, preferred_element_type=jnp.float32)
        r = jax.nn.sigmoid(gi_t[:, 0:Hp] + gh[:, 0:Hp])
        z = jax.nn.sigmoid(gi_t[:, Hp:2 * Hp] + gh[:, Hp:2 * Hp])
        n = jnp.tanh(gi_t[:, 2 * Hp:3 * Hp] + r * (gh[:, 2 * Hp:3 * Hp] + bhn))
        h_new = (1.0 - z) * n + z * h_prev
        rnn_scratch[pl.ds(off, B), :] = h_new             # lane-dense store (Hp=128)
        return h_new

    h_fin = lax.fori_loop(0, T, step, h0_ref[...].astype(jnp.float32),
                          unroll=unroll)
    hfin_ref[...] = h_fin.astype(hfin_ref.dtype)

    # ---- Hoisted output projection: one (T*Bp, Hp) x (Hp, Vp) MXU pass ----
    logits_ref[...] = (
        jnp.dot(rnn_scratch[...], wout_ref[...],
                preferred_element_type=jnp.float32)
        + bout_ref[...]).astype(logits_ref.dtype)


# ---------------------------------------------------------------------------
# Wrapper
# ---------------------------------------------------------------------------
def _round_up(x, m):
    return ((x + m - 1) // m) * m


@functools.partial(jax.jit, static_argnames=("max_seq_size",))
def decoder_forward(x, h0, weights, max_seq_size):
    """x: (T, B, E) f32, h0: (1, B, H) f32. Returns (linear_out, hidden, attn_w)."""
    T, B, E = x.shape
    w_ih, w_hh, b_ih, b_hh, w_lin, b_lin = weights
    H = w_hh.shape[1]
    V = w_lin.shape[0]

    B_pad = _round_up(B, 8)        # sublane-aligned per-step row slices
    H_pad = _round_up(H, 128)      # lane-aligned per-gate slabs
    V_pad = _round_up(V, 128)      # lane-dense logits store

    # ---- Pad activations -------------------------------------------------
    x_p = jnp.zeros((T, B_pad, E), jnp.float32).at[:, :B, :].set(x)
    x2d = x_p.reshape(T * B_pad, E)                       # free row-major reshape
    h0_p = jnp.zeros((B_pad, H_pad), jnp.float32).at[:B, :H].set(h0[0])

    # ---- Per-gate lane-padded parameter slabs (gate order r | z | n) ------
    w_ih_t = w_ih.T.astype(jnp.float32)                   # (E, 3H)
    w_hh_t = w_hh.T.astype(jnp.float32)                   # (H, 3H)
    wi_pad = jnp.zeros((E, 3 * H_pad), jnp.float32)
    wh_pad = jnp.zeros((H_pad, 3 * H_pad), jnp.float32)
    for g in range(3):
        wi_pad = wi_pad.at[:, g * H_pad:g * H_pad + H].set(
            w_ih_t[:, g * H:(g + 1) * H])
        wh_pad = wh_pad.at[:H, g * H_pad:g * H_pad + H].set(
            w_hh_t[:, g * H:(g + 1) * H])

    # Hoisted biases: fold b_hr, b_hz into the input-side bias; b_in hoisted
    # as-is; b_hn must remain inside r * (.) so it stays separate.
    bi_pad = jnp.zeros((1, 3 * H_pad), jnp.float32)
    bi_pad = bi_pad.at[0, 0:H].set(b_ih[0:H] + b_hh[0:H])                    # r
    bi_pad = bi_pad.at[0, H_pad:H_pad + H].set(b_ih[H:2 * H] + b_hh[H:2 * H])  # z
    bi_pad = bi_pad.at[0, 2 * H_pad:2 * H_pad + H].set(b_ih[2 * H:3 * H])      # n (input)
    bhn_pad = jnp.zeros((1, H_pad), jnp.float32).at[0, :H].set(b_hh[2 * H:3 * H])

    wout_pad = jnp.zeros((H_pad, V_pad), jnp.float32).at[:H, :V].set(w_lin.T)
    bout_pad = jnp.zeros((1, V_pad), jnp.float32).at[0, :V].set(b_lin)

    # ---- Scoped-VMEM budget: actual resident bytes, 2x headroom, clamped --
    f32 = 4
    resident = f32 * (
        T * B_pad * E + B_pad * H_pad                      # x2d, h0
        + E * 3 * H_pad + H_pad * 3 * H_pad                # wi, wh
        + 3 * H_pad + H_pad + H_pad * V_pad + V_pad        # biases, wout, bout
        + T * B_pad * V_pad + B_pad * H_pad                # logits, hfin
        + T * B_pad * 3 * H_pad + T * B_pad * H_pad)       # gi, rnn scratch
    vmem_limit = int(min(max(2 * resident + (1 << 20), 32 << 20), 64 << 20))

    vmem = pl.BlockSpec(memory_space=pltpu.MemorySpace.VMEM)
    kernel = functools.partial(gru_decoder_kernel,
                               seq_len=T, batch=B_pad, hidden_pad=H_pad,
                               unroll=min(T, 8))

    logits2d, h_fin = pl.pallas_call(
        kernel,
        out_shape=(
            jax.ShapeDtypeStruct((T * B_pad, V_pad), jnp.float32),
            jax.ShapeDtypeStruct((B_pad, H_pad), jnp.float32),
        ),
        in_specs=[vmem] * 8,
        out_specs=(vmem, vmem),
        scratch_shapes=[
            pltpu.VMEM((T * B_pad, 3 * H_pad), jnp.float32),   # gi for all steps
            pltpu.VMEM((T * B_pad, H_pad), jnp.float32),       # rnn_out for all steps
        ],
        compiler_params=pltpu.CompilerParams(vmem_limit_bytes=vmem_limit),
    )(x2d, h0_p, wi_pad, wh_pad, bi_pad, bhn_pad, wout_pad, bout_pad)

    linear_out = logits2d.reshape(T, B_pad, V_pad)[:, :B, :V]
    hidden_state = h_fin[:B, :H][None]                     # (num_layers=1, B, H)
    attn_weights = jnp.zeros((B, max_seq_size, 1), jnp.float32)
    return linear_out, hidden_state, attn_weights


# ---------------------------------------------------------------------------
# Pure-JAX reference (mirrors torch.nn.GRU + nn.Linear) for validation
# ---------------------------------------------------------------------------
def decoder_reference(x, h0, weights):
    w_ih, w_hh, b_ih, b_hh, w_lin, b_lin = weights
    H = w_hh.shape[1]

    def step(h, x_t):
        gi = x_t @ w_ih.T + b_ih
        gh = h @ w_hh.T + b_hh
        i_r, i_z, i_n = gi[:, :H], gi[:, H:2 * H], gi[:, 2 * H:]
        h_r, h_z, h_n = gh[:, :H], gh[:, H:2 * H], gh[:, 2 * H:]
        r = jax.nn.sigmoid(i_r + h_r)
        z = jax.nn.sigmoid(i_z + h_z)
        n = jnp.tanh(i_n + r * h_n)
        h_new = (1.0 - z) * n + z * h
        return h_new, h_new

    h_last, rnn_out = jax.lax.scan(step, h0[0], x)
    return rnn_out @ w_lin.T + b_lin, h_last[None]


# ---------------------------------------------------------------------------
if __name__ == "__main__":
    # params = {'embed_size': 32, 'hidden_size': 32, 'rnn_type': 'GRU',
    #           'num_layers': 1, 'target_vocab_size': 64, 'max_seq_size': 10}
    T, B, E, H, V, MAX_SEQ = 8, 4, 32, 32, 64, 10

    key = jax.random.PRNGKey(0)
    ks = jax.random.split(key, 8)
    k_scale = 1.0 / jnp.sqrt(H)
    w_ih = jax.random.uniform(ks[0], (3 * H, E), jnp.float32, -k_scale, k_scale)
    w_hh = jax.random.uniform(ks[1], (3 * H, H), jnp.float32, -k_scale, k_scale)
    b_ih = jax.random.uniform(ks[2], (3 * H,), jnp.float32, -k_scale, k_scale)
    b_hh = jax.random.uniform(ks[3], (3 * H,), jnp.float32, -k_scale, k_scale)
    w_lin = jax.random.uniform(ks[4], (V, H), jnp.float32, -k_scale, k_scale)
    b_lin = jax.random.uniform(ks[5], (V,), jnp.float32, -k_scale, k_scale)
    weights = (w_ih, w_hh, b_ih, b_hh, w_lin, b_lin)

    x = jax.random.normal(ks[6], (T, B, E), jnp.float32)        # (seq, batch, embed)
    h0 = jnp.zeros((1, B, H), jnp.float32)                       # initHidden

    linear_out, hidden_state, attn_w = decoder_forward(x, h0, weights, MAX_SEQ)
    jax.block_until_ready((linear_out, hidden_state, attn_w))

    ref_out, ref_hidden = decoder_reference(x, h0, weights)
    assert linear_out.shape == (T, B, V)
    assert hidden_state.shape == (1, B, H)
    assert attn_w.shape == (B, MAX_SEQ, 1)
    assert jnp.allclose(linear_out, ref_out, atol=1e-5, rtol=1e-5)
    assert jnp.allclose(hidden_state, ref_hidden, atol=1e-5, rtol=1e-5)
    assert float(jnp.abs(attn_w).max()) == 0.0

    print("KERNEL_OK")
</pallas_src>

<mosaic_0001>
module attributes {stable_mosaic.version = 11 : i64} {
  func.func @gru_decoder_kernel(%arg0: memref<64x32xf32, #tpu.memory_space<vmem>>, %arg1: memref<8x128xf32, #tpu.memory_space<vmem>>, %arg2: memref<32x384xf32, #tpu.memory_space<vmem>>, %arg3: memref<128x384xf32, #tpu.memory_space<vmem>>, %arg4: memref<1x384xf32, #tpu.memory_space<vmem>>, %arg5: memref<1x128xf32, #tpu.memory_space<vmem>>, %arg6: memref<128x128xf32, #tpu.memory_space<vmem>>, %arg7: memref<1x128xf32, #tpu.memory_space<vmem>>, %arg8: memref<64x128xf32, #tpu.memory_space<vmem>>, %arg9: memref<8x128xf32, #tpu.memory_space<vmem>>, %arg10: memref<64x384xf32, #tpu.memory_space<vmem>>, %arg11: memref<64x128xf32, #tpu.memory_space<vmem>>) attributes {dimension_semantics = [], scalar_prefetch = 0 : i64, scratch_operands = 2 : i64, tpu.core_type = #tpu.core_type<tc>} {
    %c0 = arith.constant 0 : index
    %c0_0 = arith.constant 0 : index
    %0 = vector.load %arg0[%c0, %c0_0] : memref<64x32xf32, #tpu.memory_space<vmem>>, vector<64x32xf32>
    %c0_1 = arith.constant 0 : index
    %c0_2 = arith.constant 0 : index
    %1 = vector.load %arg2[%c0_1, %c0_2] : memref<32x384xf32, #tpu.memory_space<vmem>>, vector<32x384xf32>
    %cst = arith.constant dense<0.000000e+00> : vector<64x384xf32>
    %2 = tpu.matmul %0, %1, %cst {dimension_numbers = #tpu.dot_dimension_numbers<[1], [0], [0], [1], [0, 0, 1, 1], [], []>} : vector<64x32xf32>, vector<32x384xf32>, vector<64x384xf32> -> vector<64x384xf32>
    %c0_3 = arith.constant 0 : index
    %c0_4 = arith.constant 0 : index
    %3 = vector.load %arg4[%c0_3, %c0_4] : memref<1x384xf32, #tpu.memory_space<vmem>>, vector<1x384xf32>
    %4 = vector.broadcast %3 : vector<1x384xf32> to vector<64x384xf32>
    %5 = arith.addf %2, %4 : vector<64x384xf32>
    %c0_5 = arith.constant 0 : index
    %c0_6 = arith.constant 0 : index
    %6 = vector.load %arg10[%c0_5, %c0_6] : memref<64x384xf32, #tpu.memory_space<vmem>>, vector<64x384xf32>
    tpu.vector_store %arg10[%c0_5, %c0_6], %5 {strides = array<i32>} : memref<64x384xf32, #tpu.memory_space<vmem>>, vector<64x384xf32>,
    %c0_7 = arith.constant 0 : index
    %c0_8 = arith.constant 0 : index
    %7 = vector.load %arg3[%c0_7, %c0_8] : memref<128x384xf32, #tpu.memory_space<vmem>>, vector<128x384xf32>
    %c0_9 = arith.constant 0 : index
    %c0_10 = arith.constant 0 : index
    %8 = vector.load %arg5[%c0_9, %c0_10] : memref<1x128xf32, #tpu.memory_space<vmem>>, vector<1x128xf32>
    %9 = vector.shape_cast %8 : vector<1x128xf32> to vector<1x128xf32>
    %10 = vector.broadcast %9 : vector<1x128xf32> to vector<8x128xf32>
    %c0_11 = arith.constant 0 : index
    %c0_12 = arith.constant 0 : index
    %11 = vector.load %arg1[%c0_11, %c0_12] : memref<8x128xf32, #tpu.memory_space<vmem>>, vector<8x128xf32>
    %c0_i32 = arith.constant 0 : i32
    %c8_i32 = arith.constant 8 : i32
    %12 = arith.muli %c0_i32, %c8_i32 : i32
    %13 = tpu.assume_multiple %12, 8 : i32
    %14 = arith.index_cast %13 : i32 to index
    %c0_13 = arith.constant 0 : index
    %15 = vector.load %arg10[%14, %c0_13] : memref<64x384xf32, #tpu.memory_space<vmem>>, vector<8x384xf32>
    %cst_14 = arith.constant dense<0.000000e+00> : vector<8x384xf32>
    %16 = tpu.matmul %11, %7, %cst_14 {dimension_numbers = #tpu.dot_dimension_numbers<[1], [0], [0], [1], [0, 0, 1, 1], [], []>} : vector<8x128xf32>, vector<128x384xf32>, vector<8x384xf32> -> vector<8x384xf32>
    %17 = vector.extract_strided_slice %15 {offsets = [0, 0], sizes = [8, 128], strides = [1, 1]} : vector<8x384xf32> to vector<8x128xf32>
    %18 = vector.extract_strided_slice %16 {offsets = [0, 0], sizes = [8, 128], strides = [1, 1]} : vector<8x384xf32> to vector<8x128xf32>
    %19 = arith.addf %17, %18 : vector<8x128xf32>
    %20 = arith.negf %19 : vector<8x128xf32>
    %21 = math.exp %20 : vector<8x128xf32>
    %cst_15 = arith.constant 1.000000e+00 : f32
    %22 = vector.broadcast %cst_15 : f32 to vector<8x128xf32>
    %23 = arith.addf %22, %21 : vector<8x128xf32>
    %24 = arith.divf %22, %23 : vector<8x128xf32>
    %25 = vector.extract_strided_slice %15 {offsets = [0, 128], sizes = [8, 128], strides = [1, 1]} : vector<8x384xf32> to vector<8x128xf32>
    %26 = vector.extract_strided_slice %16 {offsets = [0, 128], sizes = [8, 128], strides = [1, 1]} : vector<8x384xf32> to vector<8x128xf32>
    %27 = arith.addf %25, %26 : vector<8x128xf32>
    %28 = arith.negf %27 : vector<8x128xf32>
    %29 = math.exp %28 : vector<8x128xf32>
    %cst_16 = arith.constant 1.000000e+00 : f32
    %30 = vector.broadcast %cst_16 : f32 to vector<8x128xf32>
    %31 = arith.addf %30, %29 : vector<8x128xf32>
    %32 = arith.divf %30, %31 : vector<8x128xf32>
    %33 = vector.extract_strided_slice %15 {offsets = [0, 256], sizes = [8, 128], strides = [1, 1]} : vector<8x384xf32> to vector<8x128xf32>
    %34 = vector.extract_strided_slice %16 {offsets = [0, 256], sizes = [8, 128], strides = [1, 1]} : vector<8x384xf32> to vector<8x128xf32>
    %35 = arith.addf %34, %10 : vector<8x128xf32>
    %36 = arith.mulf %24, %35 : vector<8x128xf32>
    %37 = arith.addf %33, %36 : vector<8x128xf32>
    %38 = math.tanh %37 : vector<8x128xf32>
    %cst_17 = arith.constant 1.000000e+00 : f32
    %39 = vector.broadcast %cst_17 : f32 to vector<8x128xf32>
    %40 = arith.subf %39, %32 : vector<8x128xf32>
    %41 = arith.mulf %40, %38 : vector<8x128xf32>
    %42 = arith.mulf %32, %11 : vector<8x128xf32>
    %43 = arith.addf %41, %42 : vector<8x128xf32>
    %44 = arith.index_cast %13 : i32 to index
    %c0_18 = arith.constant 0 : index
    %45 = vector.load %arg11[%44, %c0_18] : memref<64x128xf32, #tpu.memory_space<vmem>>, vector<8x128xf32>
    tpu.vector_store %arg11[%44, %c0_18], %43 {strides = array<i32>} : memref<64x128xf32, #tpu.memory_space<vmem>>, vector<8x128xf32>,
    %c1_i32 = arith.constant 1 : i32
    %c8_i32_19 = arith.constant 8 : i32
    %46 = arith.muli %c1_i32, %c8_i32_19 : i32
    %47 = tpu.assume_multiple %46, 8 : i32
    %48 = arith.index_cast %47 : i32 to index
    %c0_20 = arith.constant 0 : index
    %49 = vector.load %arg10[%48, %c0_20] : memref<64x384xf32, #tpu.memory_space<vmem>>, vector<8x384xf32>
    %cst_21 = arith.constant dense<0.000000e+00> : vector<8x384xf32>
    %50 = tpu.matmul %43, %7, %cst_21 {dimension_numbers = #tpu.dot_dimension_numbers<[1], [0], [0], [1], [0, 0, 1, 1], [], []>} : vector<8x128xf32>, vector<128x384xf32>, vector<8x384xf32> -> vector<8x384xf32>
    %51 = vector.extract_strided_slice %49 {offsets = [0, 0], sizes = [8, 128], strides = [1, 1]} : vector<8x384xf32> to vector<8x128xf32>
    %52 = vector.extract_strided_slice %50 {offsets = [0, 0], sizes = [8, 128], strides = [1, 1]} : vector<8x384xf32> to vector<8x128xf32>
    %53 = arith.addf %51, %52 : vector<8x128xf32>
    %54 = arith.negf %53 : vector<8x128xf32>
    %55 = math.exp %54 : vector<8x128xf32>
    %cst_22 = arith.constant 1.000000e+00 : f32
    %56 = vector.broadcast %cst_22 : f32 to vector<8x128xf32>
    %57 = arith.addf %56, %55 : vector<8x128xf32>
    %58 = arith.divf %56, %57 : vector<8x128xf32>
    %59 = vector.extract_strided_slice %49 {offsets = [0, 128], sizes = [8, 128], strides = [1, 1]} : vector<8x384xf32> to vector<8x128xf32>
    %60 = vector.extract_strided_slice %50 {offsets = [0, 128], sizes = [8, 128], strides = [1, 1]} : vector<8x384xf32> to vector<8x128xf32>
    %61 = arith.addf %59, %60 : vector<8x128xf32>
    %62 = arith.negf %61 : vector<8x128xf32>
    %63 = math.exp %62 : vector<8x128xf32>
    %cst_23 = arith.constant 1.000000e+00 : f32
    %64 = vector.broadcast %cst_23 : f32 to vector<8x128xf32>
    %65 = arith.addf %64, %63 : vector<8x128xf32>
    %66 = arith.divf %64, %65 : vector<8x128xf32>
    %67 = vector.extract_strided_slice %49 {offsets = [0, 256], sizes = [8, 128], strides = [1, 1]} : vector<8x384xf32> to vector<8x128xf32>
    %68 = vector.extract_strided_slice %50 {offsets = [0, 256], sizes = [8, 128], strides = [1, 1]} : vector<8x384xf32> to vector<8x128xf32>
    %69 = arith.addf %68, %10 : vector<8x128xf32>
    %70 = arith.mulf %58, %69 : vector<8x128xf32>
    %71 = arith.addf %67, %70 : vector<8x128xf32>
    %72 = math.tanh %71 : vector<8x128xf32>
    %cst_24 = arith.constant 1.000000e+00 : f32
    %73 = vector.broadcast %cst_24 : f32 to vector<8x128xf32>
    %74 = arith.subf %73, %66 : vector<8x128xf32>
    %75 = arith.mulf %74, %72 : vector<8x128xf32>
    %76 = arith.mulf %66, %43 : vector<8x128xf32>
    %77 = arith.addf %75, %76 : vector<8x128xf32>
    %78 = arith.index_cast %47 : i32 to index
    %c0_25 = arith.constant 0 : index
    %79 = vector.load %arg11[%78, %c0_25] : memref<64x128xf32, #tpu.memory_space<vmem>>, vector<8x128xf32>
    tpu.vector_store %arg11[%78, %c0_25], %77 {strides = array<i32>} : memref<64x128xf32, #tpu.memory_space<vmem>>, vector<8x128xf32>,
    %c2_i32 = arith.constant 2 : i32
    %c8_i32_26 = arith.constant 8 : i32
    %80 = arith.muli %c2_i32, %c8_i32_26 : i32
    %81 = tpu.assume_multiple %80, 8 : i32
    %82 = arith.index_cast %81 : i32 to index
    %c0_27 = arith.constant 0 : index
    %83 = vector.load %arg10[%82, %c0_27] : memref<64x384xf32, #tpu.memory_space<vmem>>, vector<8x384xf32>
    %cst_28 = arith.constant dense<0.000000e+00> : vector<8x384xf32>
    %84 = tpu.matmul %77, %7, %cst_28 {dimension_numbers = #tpu.dot_dimension_numbers<[1], [0], [0], [1], [0, 0, 1, 1], [], []>} : vector<8x128xf32>, vector<128x384xf32>, vector<8x384xf32> -> vector<8x384xf32>
    %85 = vector.extract_strided_slice %83 {offsets = [0, 0], sizes = [8, 128], strides = [1, 1]} : vector<8x384xf32> to vector<8x128xf32>
    %86 = vector.extract_strided_slice %84 {offsets = [0, 0], sizes = [8, 128], strides = [1, 1]} : vector<8x384xf32> to vector<8x128xf32>
    %87 = arith.addf %85, %86 : vector<8x128xf32>
    %88 = arith.negf %87 : vector<8x128xf32>
    %89 = math.exp %88 : vector<8x128xf32>
    %cst_29 = arith.constant 1.000000e+00 : f32
    %90 = vector.broadcast %cst_29 : f32 to vector<8x128xf32>
    %91 = arith.addf %90, %89 : vector<8x128xf32>
    %92 = arith.divf %90, %91 : vector<8x128xf32>
    %93 = vector.extract_strided_slice %83 {offsets = [0, 128], sizes = [8, 128], strides = [1, 1]} : vector<8x384xf32> to vector<8x128xf32>
    %94 = vector.extract_strided_slice %84 {offsets = [0, 128], sizes = [8, 128], strides = [1, 1]} : vector<8x384xf32> to vector<8x128xf32>
    %95 = arith.addf %93, %94 : vector<8x128xf32>
    %96 = arith.negf %95 : vector<8x128xf32>
    %97 = math.exp %96 : vector<8x128xf32>
    %cst_30 = arith.constant 1.000000e+00 : f32
    %98 = vector.broadcast %cst_30 : f32 to vector<8x128xf32>
    %99 = arith.addf %98, %97 : vector<8x128xf32>
    %100 = arith.divf %98, %99 : vector<8x128xf32>
    %101 = vector.extract_strided_slice %83 {offsets = [0, 256], sizes = [8, 128], strides = [1, 1]} : vector<8x384xf32> to vector<8x128xf32>
    %102 = vector.extract_strided_slice %84 {offsets = [0, 256], sizes = [8, 128], strides = [1, 1]} : vector<8x384xf32> to vector<8x128xf32>
    %103 = arith.addf %102, %10 : vector<8x128xf32>
    %104 = arith.mulf %92, %103 : vector<8x128xf32>
    %105 = arith.addf %101, %104 : vector<8x128xf32>
    %106 = math.tanh %105 : vector<8x128xf32>
    %cst_31 = arith.constant 1.000000e+00 : f32
    %107 = vector.broadcast %cst_31 : f32 to vector<8x128xf32>
    %108 = arith.subf %107, %100 : vector<8x128xf32>
    %109 = arith.mulf %108, %106 : vector<8x128xf32>
    %110 = arith.mulf %100, %77 : vector<8x128xf32>
    %111 = arith.addf %109, %110 : vector<8x128xf32>
    %112 = arith.index_cast %81 : i32 to index
    %c0_32 = arith.constant 0 : index
    %113 = vector.load %arg11[%112, %c0_32] : memref<64x128xf32, #tpu.memory_space<vmem>>, vector<8x128xf32>
    tpu.vector_store %arg11[%112, %c0_32], %111 {strides = array<i32>} : memref<64x128xf32, #tpu.memory_space<vmem>>, vector<8x128xf32>,
    %c3_i32 = arith.constant 3 : i32
    %c8_i32_33 = arith.constant 8 : i32
    %114 = arith.muli %c3_i32, %c8_i32_33 : i32
    %115 = tpu.assume_multiple %114, 8 : i32
    %116 = arith.index_cast %115 : i32 to index
    %c0_34 = arith.constant 0 : index
    %117 = vector.load %arg10[%116, %c0_34] : memref<64x384xf32, #tpu.memory_space<vmem>>, vector<8x384xf32>
    %cst_35 = arith.constant dense<0.000000e+00> : vector<8x384xf32>
    %118 = tpu.matmul %111, %7, %cst_35 {dimension_numbers = #tpu.dot_dimension_numbers<[1], [0], [0], [1], [0, 0, 1, 1], [], []>} : vector<8x128xf32>, vector<128x384xf32>, vector<8x384xf32> -> vector<8x384xf32>
    %119 = vector.extract_strided_slice %117 {offsets = [0, 0], sizes = [8, 128], strides = [1, 1]} : vector<8x384xf32> to vector<8x128xf32>
    %120 = vector.extract_strided_slice %118 {offsets = [0, 0], sizes = [8, 128], strides = [1, 1]} : vector<8x384xf32> to vector<8x128xf32>
    %121 = arith.addf %119, %120 : vector<8x128xf32>
    %122 = arith.negf %121 : vector<8x128xf32>
    %123 = math.exp %122 : vector<8x128xf32>
    %cst_36 = arith.constant 1.000000e+00 : f32
    %124 = vector.broadcast %cst_36 : f32 to vector<8x128xf32>
    %125 = arith.addf %124, %123 : vector<8x128xf32>
    %126 = arith.divf %124, %125 : vector<8x128xf32>
    %127 = vector.extract_strided_slice %117 {offsets = [0, 128], sizes = [8, 128], strides = [1, 1]} : vector<8x384xf32> to vector<8x128xf32>
    %128 = vector.extract_strided_slice %118 {offsets = [0, 128], sizes = [8, 128], strides = [1, 1]} : vector<8x384xf32> to vector<8x128xf32>
    %129 = arith.addf %127, %128 : vector<8x128xf32>
    %130 = arith.negf %129 : vector<8x128xf32>
    %131 = math.exp %130 : vector<8x128xf32>
    %cst_37 = arith.constant 1.000000e+00 : f32
    %132 = vector.broadcast %cst_37 : f32 to vector<8x128xf32>
    %133 = arith.addf %132, %131 : vector<8x128xf32>
    %134 = arith.divf %132, %133 : vector<8x128xf32>
    %135 = vector.extract_strided_slice %117 {offsets = [0, 256], sizes = [8, 128], strides = [1, 1]} : vector<8x384xf32> to vector<8x128xf32>
    %136 = vector.extract_strided_slice %118 {offsets = [0, 256], sizes = [8, 128], strides = [1, 1]} : vector<8x384xf32> to vector<8x128xf32>
    %137 = arith.addf %136, %10 : vector<8x128xf32>
    %138 = arith.mulf %126, %137 : vector<8x128xf32>
    %139 = arith.addf %135, %138 : vector<8x128xf32>
    %140 = math.tanh %139 : vector<8x128xf32>
    %cst_38 = arith.constant 1.000000e+00 : f32
    %141 = vector.broadcast %cst_38 : f32 to vector<8x128xf32>
    %142 = arith.subf %141, %134 : vector<8x128xf32>
    %143 = arith.mulf %142, %140 : vector<8x128xf32>
    %144 = arith.mulf %134, %111 : vector<8x128xf32>
    %145 = arith.addf %143, %144 : vector<8x128xf32>
    %146 = arith.index_cast %115 : i32 to index
    %c0_39 = arith.constant 0 : index
    %147 = vector.load %arg11[%146, %c0_39] : memref<64x128xf32, #tpu.memory_space<vmem>>, vector<8x128xf32>
    tpu.vector_store %arg11[%146, %c0_39], %145 {strides = array<i32>} : memref<64x128xf32, #tpu.memory_space<vmem>>, vector<8x128xf32>,
    %c4_i32 = arith.constant 4 : i32
    %c8_i32_40 = arith.constant 8 : i32
    %148 = arith.muli %c4_i32, %c8_i32_40 : i32
    %149 = tpu.assume_multiple %148, 8 : i32
    %150 = arith.index_cast %149 : i32 to index
    %c0_41 = arith.constant 0 : index
    %151 = vector.load %arg10[%150, %c0_41] : memref<64x384xf32, #tpu.memory_space<vmem>>, vector<8x384xf32>
    %cst_42 = arith.constant dense<0.000000e+00> : vector<8x384xf32>
    %152 = tpu.matmul %145, %7, %cst_42 {dimension_numbers = #tpu.dot_dimension_numbers<[1], [0], [0], [1], [0, 0, 1, 1], [], []>} : vector<8x128xf32>, vector<128x384xf32>, vector<8x384xf32> -> vector<8x384xf32>
    %153 = vector.extract_strided_slice %151 {offsets = [0, 0], sizes = [8, 128], strides = [1, 1]} : vector<8x384xf32> to vector<8x128xf32>
    %154 = vector.extract_strided_slice %152 {offsets = [0, 0], sizes = [8, 128], strides = [1, 1]} : vector<8x384xf32> to vector<8x128xf32>
    %155 = arith.addf %153, %154 : vector<8x128xf32>
    %156 = arith.negf %155 : vector<8x128xf32>
    %157 = math.exp %156 : vector<8x128xf32>
    %cst_43 = arith.constant 1.000000e+00 : f32
    %158 = vector.broadcast %cst_43 : f32 to vector<8x128xf32>
    %159 = arith.addf %158, %157 : vector<8x128xf32>
    %160 = arith.divf %158, %159 : vector<8x128xf32>
    %161 = vector.extract_strided_slice %151 {offsets = [0, 128], sizes = [8, 128], strides = [1, 1]} : vector<8x384xf32> to vector<8x128xf32>
    %162 = vector.extract_strided_slice %152 {offsets = [0, 128], sizes = [8, 128], strides = [1, 1]} : vector<8x384xf32> to vector<8x128xf32>
    %163 = arith.addf %161, %162 : vector<8x128xf32>
    %164 = arith.negf %163 : vector<8x128xf32>
    %165 = math.exp %164 : vector<8x128xf32>
    %cst_44 = arith.constant 1.000000e+00 : f32
    %166 = vector.broadcast %cst_44 : f32 to vector<8x128xf32>
    %167 = arith.addf %166, %165 : vector<8x128xf32>
    %168 = arith.divf %166, %167 : vector<8x128xf32>
    %169 = vector.extract_strided_slice %151 {offsets = [0, 256], sizes = [8, 128], strides = [1, 1]} : vector<8x384xf32> to vector<8x128xf32>
    %170 = vector.extract_strided_slice %152 {offsets = [0, 256], sizes = [8, 128], strides = [1, 1]} : vector<8x384xf32> to vector<8x128xf32>
    %171 = arith.addf %170, %10 : vector<8x128xf32>
    %172 = arith.mulf %160, %171 : vector<8x128xf32>
    %173 = arith.addf %169, %172 : vector<8x128xf32>
    %174 = math.tanh %173 : vector<8x128xf32>
    %cst_45 = arith.constant 1.000000e+00 : f32
    %175 = vector.broadcast %cst_45 : f32 to vector<8x128xf32>
    %176 = arith.subf %175, %168 : vector<8x128xf32>
    %177 = arith.mulf %176, %174 : vector<8x128xf32>
    %178 = arith.mulf %168, %145 : vector<8x128xf32>
    %179 = arith.addf %177, %178 : vector<8x128xf32>
    %180 = arith.index_cast %149 : i32 to index
    %c0_46 = arith.constant 0 : index
    %181 = vector.load %arg11[%180, %c0_46] : memref<64x128xf32, #tpu.memory_space<vmem>>, vector<8x128xf32>
    tpu.vector_store %arg11[%180, %c0_46], %179 {strides = array<i32>} : memref<64x128xf32, #tpu.memory_space<vmem>>, vector<8x128xf32>,
    %c5_i32 = arith.constant 5 : i32
    %c8_i32_47 = arith.constant 8 : i32
    %182 = arith.muli %c5_i32, %c8_i32_47 : i32
    %183 = tpu.assume_multiple %182, 8 : i32
    %184 = arith.index_cast %183 : i32 to index
    %c0_48 = arith.constant 0 : index
    %185 = vector.load %arg10[%184, %c0_48] : memref<64x384xf32, #tpu.memory_space<vmem>>, vector<8x384xf32>
    %cst_49 = arith.constant dense<0.000000e+00> : vector<8x384xf32>
    %186 = tpu.matmul %179, %7, %cst_49 {dimension_numbers = #tpu.dot_dimension_numbers<[1], [0], [0], [1], [0, 0, 1, 1], [], []>} : vector<8x128xf32>, vector<128x384xf32>, vector<8x384xf32> -> vector<8x384xf32>
    %187 = vector.extract_strided_slice %185 {offsets = [0, 0], sizes = [8, 128], strides = [1, 1]} : vector<8x384xf32> to vector<8x128xf32>
    %188 = vector.extract_strided_slice %186 {offsets = [0, 0], sizes = [8, 128], strides = [1, 1]} : vector<8x384xf32> to vector<8x128xf32>
    %189 = arith.addf %187, %188 : vector<8x128xf32>
    %190 = arith.negf %189 : vector<8x128xf32>
    %191 = math.exp %190 : vector<8x128xf32>
    %cst_50 = arith.constant 1.000000e+00 : f32
    %192 = vector.broadcast %cst_50 : f32 to vector<8x128xf32>
    %193 = arith.addf %192, %191 : vector<8x128xf32>
    %194 = arith.divf %192, %193 : vector<8x128xf32>
    %195 = vector.extract_strided_slice %185 {offsets = [0, 128], sizes = [8, 128], strides = [1, 1]} : vector<8x384xf32> to vector<8x128xf32>
    %196 = vector.extract_strided_slice %186 {offsets = [0, 128], sizes = [8, 128], strides = [1, 1]} : vector<8x384xf32> to vector<8x128xf32>
    %197 = arith.addf %195, %196 : vector<8x128xf32>
    %198 = arith.negf %197 : vector<8x128xf32>
    %199 = math.exp %198 : vector<8x128xf32>
    %cst_51 = arith.constant 1.000000e+00 : f32
    %200 = vector.broadcast %cst_51 : f32 to vector<8x128xf32>
    %201 = arith.addf %200, %199 : vector<8x128xf32>
    %202 = arith.divf %200, %201 : vector<8x128xf32>
    %203 = vector.extract_strided_slice %185 {offsets = [0, 256], sizes = [8, 128], strides = [1, 1]} : vector<8x384xf32> to vector<8x128xf32>
    %204 = vector.extract_strided_slice %186 {offsets = [0, 256], sizes = [8, 128], strides = [1, 1]} : vector<8x384xf32> to vector<8x128xf32>
    %205 = arith.addf %204, %10 : vector<8x128xf32>
    %206 = arith.mulf %194, %205 : vector<8x128xf32>
    %207 = arith.addf %203, %206 : vector<8x128xf32>
    %208 = math.tanh %207 : vector<8x128xf32>
    %cst_52 = arith.constant 1.000000e+00 : f32
    %209 = vector.broadcast %cst_52 : f32 to vector<8x128xf32>
    %210 = arith.subf %209, %202 : vector<8x128xf32>
    %211 = arith.mulf %210, %208 : vector<8x128xf32>
    %212 = arith.mulf %202, %179 : vector<8x128xf32>
    %213 = arith.addf %211, %212 : vector<8x128xf32>
    %214 = arith.index_cast %183 : i32 to index
    %c0_53 = arith.constant 0 : index
    %215 = vector.load %arg11[%214, %c0_53] : memref<64x128xf32, #tpu.memory_space<vmem>>, vector<8x128xf32>
    tpu.vector_store %arg11[%214, %c0_53], %213 {strides = array<i32>} : memref<64x128xf32, #tpu.memory_space<vmem>>, vector<8x128xf32>,
    %c6_i32 = arith.constant 6 : i32
    %c8_i32_54 = arith.constant 8 : i32
    %216 = arith.muli %c6_i32, %c8_i32_54 : i32
    %217 = tpu.assume_multiple %216, 8 : i32
    %218 = arith.index_cast %217 : i32 to index
    %c0_55 = arith.constant 0 : index
    %219 = vector.load %arg10[%218, %c0_55] : memref<64x384xf32, #tpu.memory_space<vmem>>, vector<8x384xf32>
    %cst_56 = arith.constant dense<0.000000e+00> : vector<8x384xf32>
    %220 = tpu.matmul %213, %7, %cst_56 {dimension_numbers = #tpu.dot_dimension_numbers<[1], [0], [0], [1], [0, 0, 1, 1], [], []>} : vector<8x128xf32>, vector<128x384xf32>, vector<8x384xf32> -> vector<8x384xf32>
    %221 = vector.extract_strided_slice %219 {offsets = [0, 0], sizes = [8, 128], strides = [1, 1]} : vector<8x384xf32> to vector<8x128xf32>
    %222 = vector.extract_strided_slice %220 {offsets = [0, 0], sizes = [8, 128], strides = [1, 1]} : vector<8x384xf32> to vector<8x128xf32>
    %223 = arith.addf %221, %222 : vector<8x128xf32>
    %224 = arith.negf %223 : vector<8x128xf32>
    %225 = math.exp %224 : vector<8x128xf32>
    %cst_57 = arith.constant 1.000000e+00 : f32
    %226 = vector.broadcast %cst_57 : f32 to vector<8x128xf32>
    %227 = arith.addf %226, %225 : vector<8x128xf32>
    %228 = arith.divf %226, %227 : vector<8x128xf32>
    %229 = vector.extract_strided_slice %219 {offsets = [0, 128], sizes = [8, 128], strides = [1, 1]} : vector<8x384xf32> to vector<8x128xf32>
    %230 = vector.extract_strided_slice %220 {offsets = [0, 128], sizes = [8, 128], strides = [1, 1]} : vector<8x384xf32> to vector<8x128xf32>
    %231 = arith.addf %229, %230 : vector<8x128xf32>
    %232 = arith.negf %231 : vector<8x128xf32>
    %233 = math.exp %232 : vector<8x128xf32>
    %cst_58 = arith.constant 1.000000e+00 : f32
    %234 = vector.broadcast %cst_58 : f32 to vector<8x128xf32>
    %235 = arith.addf %234, %233 : vector<8x128xf32>
    %236 = arith.divf %234, %235 : vector<8x128xf32>
    %237 = vector.extract_strided_slice %219 {offsets = [0, 256], sizes = [8, 128], strides = [1, 1]} : vector<8x384xf32> to vector<8x128xf32>
    %238 = vector.extract_strided_slice %220 {offsets = [0, 256], sizes = [8, 128], strides = [1, 1]} : vector<8x384xf32> to vector<8x128xf32>
    %239 = arith.addf %238, %10 : vector<8x128xf32>
    %240 = arith.mulf %228, %239 : vector<8x128xf32>
    %241 = arith.addf %237, %240 : vector<8x128xf32>
    %242 = math.tanh %241 : vector<8x128xf32>
    %cst_59 = arith.constant 1.000000e+00 : f32
    %243 = vector.broadcast %cst_59 : f32 to vector<8x128xf32>
    %244 = arith.subf %243, %236 : vector<8x128xf32>
    %245 = arith.mulf %244, %242 : vector<8x128xf32>
    %246 = arith.mulf %236, %213 : vector<8x128xf32>
    %247 = arith.addf %245, %246 : vector<8x128xf32>
    %248 = arith.index_cast %217 : i32 to index
    %c0_60 = arith.constant 0 : index
    %249 = vector.load %arg11[%248, %c0_60] : memref<64x128xf32, #tpu.memory_space<vmem>>, vector<8x128xf32>
    tpu.vector_store %arg11[%248, %c0_60], %247 {strides = array<i32>} : memref<64x128xf32, #tpu.memory_space<vmem>>, vector<8x128xf32>,
    %c7_i32 = arith.constant 7 : i32
    %c8_i32_61 = arith.constant 8 : i32
    %250 = arith.muli %c7_i32, %c8_i32_61 : i32
    %251 = tpu.assume_multiple %250, 8 : i32
    %252 = arith.index_cast %251 : i32 to index
    %c0_62 = arith.constant 0 : index
    %253 = vector.load %arg10[%252, %c0_62] : memref<64x384xf32, #tpu.memory_space<vmem>>, vector<8x384xf32>
    %cst_63 = arith.constant dense<0.000000e+00> : vector<8x384xf32>
    %254 = tpu.matmul %247, %7, %cst_63 {dimension_numbers = #tpu.dot_dimension_numbers<[1], [0], [0], [1], [0, 0, 1, 1], [], []>} : vector<8x128xf32>, vector<128x384xf32>, vector<8x384xf32> -> vector<8x384xf32>
    %255 = vector.extract_strided_slice %253 {offsets = [0, 0], sizes = [8, 128], strides = [1, 1]} : vector<8x384xf32> to vector<8x128xf32>
    %256 = vector.extract_strided_slice %254 {offsets = [0, 0], sizes = [8, 128], strides = [1, 1]} : vector<8x384xf32> to vector<8x128xf32>
    %257 = arith.addf %255, %256 : vector<8x128xf32>
    %258 = arith.negf %257 : vector<8x128xf32>
    %259 = math.exp %258 : vector<8x128xf32>
    %cst_64 = arith.constant 1.000000e+00 : f32
    %260 = vector.broadcast %cst_64 : f32 to vector<8x128xf32>
    %261 = arith.addf %260, %259 : vector<8x128xf32>
    %262 = arith.divf %260, %261 : vector<8x128xf32>
    %263 = vector.extract_strided_slice %253 {offsets = [0, 128], sizes = [8, 128], strides = [1, 1]} : vector<8x384xf32> to vector<8x128xf32>
    %264 = vector.extract_strided_slice %254 {offsets = [0, 128], sizes = [8, 128], strides = [1, 1]} : vector<8x384xf32> to vector<8x128xf32>
    %265 = arith.addf %263, %264 : vector<8x128xf32>
    %266 = arith.negf %265 : vector<8x128xf32>
    %267 = math.exp %266 : vector<8x128xf32>
    %cst_65 = arith.constant 1.000000e+00 : f32
    %268 = vector.broadcast %cst_65 : f32 to vector<8x128xf32>
    %269 = arith.addf %268, %267 : vector<8x128xf32>
    %270 = arith.divf %268, %269 : vector<8x128xf32>
    %271 = vector.extract_strided_slice %253 {offsets = [0, 256], sizes = [8, 128], strides = [1, 1]} : vector<8x384xf32> to vector<8x128xf32>
    %272 = vector.extract_strided_slice %254 {offsets = [0, 256], sizes = [8, 128], strides = [1, 1]} : vector<8x384xf32> to vector<8x128xf32>
    %273 = arith.addf %272, %10 : vector<8x128xf32>
    %274 = arith.mulf %262, %273 : vector<8x128xf32>
    %275 = arith.addf %271, %274 : vector<8x128xf32>
    %276 = math.tanh %275 : vector<8x128xf32>
    %cst_66 = arith.constant 1.000000e+00 : f32
    %277 = vector.broadcast %cst_66 : f32 to vector<8x128xf32>
    %278 = arith.subf %277, %270 : vector<8x128xf32>
    %279 = arith.mulf %278, %276 : vector<8x128xf32>
    %280 = arith.mulf %270, %247 : vector<8x128xf32>
    %281 = arith.addf %279, %280 : vector<8x128xf32>
    %282 = arith.index_cast %251 : i32 to index
    %c0_67 = arith.constant 0 : index
    %283 = vector.load %arg11[%282, %c0_67] : memref<64x128xf32, #tpu.memory_space<vmem>>, vector<8x128xf32>
    tpu.vector_store %arg11[%282, %c0_67], %281 {strides = array<i32>} : memref<64x128xf32, #tpu.memory_space<vmem>>, vector<8x128xf32>,
    %c8_i32_68 = arith.constant 8 : i32
    %c0_69 = arith.constant 0 : index
    %c0_70 = arith.constant 0 : index
    %284 = vector.load %arg9[%c0_69, %c0_70] : memref<8x128xf32, #tpu.memory_space<vmem>>, vector<8x128xf32>
    tpu.vector_store %arg9[%c0_69, %c0_70], %281 {strides = array<i32>} : memref<8x128xf32, #tpu.memory_space<vmem>>, vector<8x128xf32>,
    %c0_71 = arith.constant 0 : index
    %c0_72 = arith.constant 0 : index
    %285 = vector.load %arg11[%c0_71, %c0_72] : memref<64x128xf32, #tpu.memory_space<vmem>>, vector<64x128xf32>
    %c0_73 = arith.constant 0 : index
    %c0_74 = arith.constant 0 : index
    %286 = vector.load %arg6[%c0_73, %c0_74] : memref<128x128xf32, #tpu.memory_space<vmem>>, vector<128x128xf32>
    %cst_75 = arith.constant dense<0.000000e+00> : vector<64x128xf32>
    %287 = tpu.matmul %285, %286, %cst_75 {dimension_numbers = #tpu.dot_dimension_numbers<[1], [0], [0], [1], [0, 0, 1, 1], [], []>} : vector<64x128xf32>, vector<128x128xf32>, vector<64x128xf32> -> vector<64x128xf32>
    %c0_76 = arith.constant 0 : index
    %c0_77 = arith.constant 0 : index
    %288 = vector.load %arg7[%c0_76, %c0_77] : memref<1x128xf32, #tpu.memory_space<vmem>>, vector<1x128xf32>
    %289 = vector.broadcast %288 : vector<1x128xf32> to vector<64x128xf32>
    %290 = arith.addf %287, %289 : vector<64x128xf32>
    %c0_78 = arith.constant 0 : index
    %c0_79 = arith.constant 0 : index
    %291 = vector.load %arg8[%c0_78, %c0_79] : memref<64x128xf32, #tpu.memory_space<vmem>>, vector<64x128xf32>
    tpu.vector_store %arg8[%c0_78, %c0_79], %290 {strides = array<i32>} : memref<64x128xf32, #tpu.memory_space<vmem>>, vector<64x128xf32>,
    return
  }
}

</mosaic_0001>

<llo_original>
// kernel: decoder_forward.1
$region0: #{decoder_forward.1}
  #allocation0 [shape = 'u32[]', space=smem, size = 0x4, offset = 0x4, fixed_abs, tag = 'smem constant byte address 0x4 - core index']
  #allocation1 [shape = 'u32[72,128]{1,0:T(1,128)}', space=vmem, size = 0x9000, scoped, tag = 'internal scratch']
  #allocation2 [shape = 'f32[64,384]{1,0:T(8,128)}', space=vmem, size = 0x18000, scoped, tag = 'scratch operand']
  #allocation3 [shape = 'f32[64,128]{1,0:T(8,128)}', space=vmem, size = 0x8000, scoped, tag = 'scratch operand']
  %s0 = inlined_call_operand.vmem [shape: f32[64,32], index: 0, kind: input, shape index: {}]
  %s1 = inlined_call_operand.vmem [shape: f32[8,128], index: 1, kind: input, shape index: {}]
  %s2 = inlined_call_operand.vmem [shape: f32[32,384], index: 2, kind: input, shape index: {}]
  %s3 = inlined_call_operand.vmem [shape: f32[128,384], index: 3, kind: input, shape index: {}]
  %s4 = inlined_call_operand.vmem [shape: f32[1,384], index: 4, kind: input, shape index: {}]
  %s5 = inlined_call_operand.vmem [shape: f32[1,128], index: 5, kind: input, shape index: {}]
  %s6 = inlined_call_operand.vmem [shape: f32[128,128], index: 6, kind: input, shape index: {}]
  %s7 = inlined_call_operand.vmem [shape: f32[1,128], index: 7, kind: input, shape index: {}]
  %s8 = inlined_call_operand.vmem [shape: f32[64,128], index: 8, kind: output, shape index: {0}]
  %s9 = inlined_call_operand.vmem [shape: f32[8,128], index: 9, kind: output, shape index: {1}]
  %10 = xla_tuple %s8, %s9
  %s11 = sld [smem:[#allocation0]]
  $region50: #{decoder_forward.1} parent=0
    _
  %s13 = ssub.s32 1, %s11
  %s14 = scalar_select 0, %s13, %s11
  // Predicated region
  $region2: #{decoder_forward.1} parent=0 // pred_check
    _
  $region3: #{decoder_forward.1} parent=0 // pred_check_branch
    %16 = sbr.rel (0) target = $region5
  $region4: #{decoder_forward.1} parent=0 // pred_region
    _
  $region5: #{decoder_forward.1} parent=0 // pred_fallthru
    _
  // Predicated region
  $region6: #{decoder_forward.1} parent=0 // pred_check
    _
  $region7: #{decoder_forward.1} parent=0 // pred_check_branch
    %18 = sbr.rel (0) target = $region9
  $region8: #{decoder_forward.1} parent=0 // pred_region
    _
  $region9: #{decoder_forward.1} parent=0 // pred_fallthru
    _
  // Predicated region
  $region10: #{decoder_forward.1} parent=0 // pred_check
    _
  $region11: #{decoder_forward.1} parent=0 // pred_check_branch
    %20 = sbr.rel (0) target = $region13
  $region12: #{decoder_forward.1} parent=0 // pred_region
    _
  $region13: #{decoder_forward.1} parent=0 // pred_fallthru
    _
  // Predicated region
  $region14: #{decoder_forward.1} parent=0 // pred_check
    _
  $region15: #{decoder_forward.1} parent=0 // pred_check_branch
    %22 = sbr.rel (0) target = $region17
  $region16: #{decoder_forward.1} parent=0 // pred_region
    _
  $region17: #{decoder_forward.1} parent=0 // pred_fallthru
    _
  // Predicated region
  $region18: #{decoder_forward.1} parent=0 // pred_check
    _
  $region19: #{decoder_forward.1} parent=0 // pred_check_branch
    %24 = sbr.rel (0) target = $region21
  $region20: #{decoder_forward.1} parent=0 // pred_region
    _
  $region21: #{decoder_forward.1} parent=0 // pred_fallthru
    _
  // Predicated region
  $region22: #{decoder_forward.1} parent=0 // pred_check
    _
  $region23: #{decoder_forward.1} parent=0 // pred_check_branch
    %26 = sbr.rel (0) target = $region25
  $region24: #{decoder_forward.1} parent=0 // pred_region
    _
  $region25: #{decoder_forward.1} parent=0 // pred_fallthru
    _
  // Predicated region
  $region26: #{decoder_forward.1} parent=0 // pred_check
    _
  $region27: #{decoder_forward.1} parent=0 // pred_check_branch
    %28 = sbr.rel (0) target = $region29
  $region28: #{decoder_forward.1} parent=0 // pred_region
    _
  $region29: #{decoder_forward.1} parent=0 // pred_fallthru
    _
  // Predicated region
  $region30: #{decoder_forward.1} parent=0 // pred_check
    _
  $region31: #{decoder_forward.1} parent=0 // pred_check_branch
    %30 = sbr.rel (0) target = $region33
  $region32: #{decoder_forward.1} parent=0 // pred_region
    _
  $region33: #{decoder_forward.1} parent=0 // pred_fallthru
    _
  %v31 = vld [vmem:[%s0] sm:$0xff]
  %v32 = vld [vmem:[%s0 + $0x8] sm:$0xff]
  %v33 = vld [vmem:[%s0 + $0x10] sm:$0xff]
  %v34 = vld [vmem:[%s0 + $0x18] sm:$0xff]
  %v35 = vld [vmem:[%s0 + $0x20] sm:$0xff]
  %v36 = vld [vmem:[%s0 + $0x28] sm:$0xff]
  %v37 = vld [vmem:[%s0 + $0x30] sm:$0xff]
  %v38 = vld [vmem:[%s0 + $0x38] sm:$0xff]
  %v39 = vld [vmem:[%s2] sm:$0xff]
  %v40 = vld [vmem:[%s2 + $0x8] sm:$0xff]
  %v41 = vld [vmem:[%s2 + $0x10] sm:$0xff]
  %v42 = vld [vmem:[%s2 + $0x18] sm:$0xff]
  %v43 = vld [vmem:[%s2 + $0x20] sm:$0xff]
  %v44 = vld [vmem:[%s2 + $0x28] sm:$0xff]
  %v45 = vld [vmem:[%s2 + $0x30] sm:$0xff]
  %v46 = vld [vmem:[%s2 + $0x38] sm:$0xff]
  %v47 = vld [vmem:[%s2 + $0x40] sm:$0xff]
  %v48 = vld [vmem:[%s2 + $0x48] sm:$0xff]
  %v49 = vld [vmem:[%s2 + $0x50] sm:$0xff]
  %v50 = vld [vmem:[%s2 + $0x58] sm:$0xff]
  %v51 = vld [vmem:[%s4] sm:$0x7]
  %v53 = vperm.slane %v51, 0
  %v54 = vperm.slane %v51, 1
  %v55 = vperm.slane %v51, 2
  %vm59 = vcmask 261120
  %v61 = vsel %vm59, %v31, 0
  %v64 = vsel %vm59, %v32, 0
  %v67 = vsel %vm59, %v33, 0
  %v70 = vsel %vm59, %v34, 0
  %v73 = vsel %vm59, %v35, 0
  %v76 = vsel %vm59, %v36, 0
  %v79 = vsel %vm59, %v37, 0
  %v82 = vsel %vm59, %v38, 0
  %84 = vmatpush.msra.mxu0 0.0
  %85 = vmatpush.msra.mxu0 0.0
  %86 = vmatpush.msra.mxu0 0.0
  %87 = vmatpush.msra.mxu0 0.0
  %88 = vmatpush.msra.mxu0 0.0
  %89 = vmatpush.msra.mxu0 0.0
  %90 = vmatpush.msra.mxu0 0.0
  %91 = vmatpush.msra.mxu0 0.0
  %92 = vmatpush.msra.mxu0 0.0
  %93 = vmatpush.msra.mxu0 0.0
  %94 = vmatpush.msra.mxu0 0.0
  %95 = vmatpush.msra.mxu0 0.0
  %96 = vmatpush.msra.mxu0 %v48
  %97 = vmatpush.msra.mxu0 %v45
  %98 = vmatpush.msra.mxu0 %v42
  %99 = vmatpush.msra.mxu0 %v39
  %100 = vmatmul.f32.gmra.mxu0 %v61
  %v101 = vpop.f32.mrf.mxu0
  %v102 = vadd.f32 %v53, %v101
  %103 = vmatmul.f32.gmra.mxu0 %v64
  %v104 = vpop.f32.mrf.mxu0
  %v105 = vadd.f32 %v53, %v104
  %106 = vmatmul.f32.gmra.mxu0 %v67
  %v107 = vpop.f32.mrf.mxu0
  %v108 = vadd.f32 %v53, %v107
  %109 = vmatmul.f32.gmra.mxu0 %v70
  %v110 = vpop.f32.mrf.mxu0
  %v111 = vadd.f32 %v53, %v110
  %112 = vmatmul.f32.gmra.mxu0 %v73
  %v113 = vpop.f32.mrf.mxu0
  %v114 = vadd.f32 %v53, %v113
  %115 = vmatmul.f32.gmra.mxu0 %v76
  %v116 = vpop.f32.mrf.mxu0
  %v117 = vadd.f32 %v53, %v116
  %118 = vmatmul.f32.gmra.mxu0 %v79
  %v119 = vpop.f32.mrf.mxu0
  %v120 = vadd.f32 %v53, %v119
  %121 = vmatmul.f32.gmra.mxu0 %v82
  %v122 = vpop.f32.mrf.mxu0
  %v123 = vadd.f32 %v53, %v122
  %124 = vdwg.mxu0
  %125 = vmatpush.msra.mxu0 0.0
  %126 = vmatpush.msra.mxu0 0.0
  %127 = vmatpush.msra.mxu0 0.0
  %128 = vmatpush.msra.mxu0 0.0
  %129 = vmatpush.msra.mxu0 0.0
  %130 = vmatpush.msra.mxu0 0.0
  %131 = vmatpush.msra.mxu0 0.0
  %132 = vmatpush.msra.mxu0 0.0
  %133 = vmatpush.msra.mxu0 0.0
  %134 = vmatpush.msra.mxu0 0.0
  %135 = vmatpush.msra.mxu0 0.0
  %136 = vmatpush.msra.mxu0 0.0
  %137 = vmatpush.msra.mxu0 %v49
  %138 = vmatpush.msra.mxu0 %v46
  %139 = vmatpush.msra.mxu0 %v43
  %140 = vmatpush.msra.mxu0 %v40
  %141 = vmatmul.f32.gmra.mxu0 %v61
  %v142 = vpop.f32.mrf.mxu0
  %v143 = vadd.f32 %v54, %v142
  %144 = vmatmul.f32.gmra.mxu0 %v64
  %v145 = vpop.f32.mrf.mxu0
  %v146 = vadd.f32 %v54, %v145
  %147 = vmatmul.f32.gmra.mxu0 %v67
  %v148 = vpop.f32.mrf.mxu0
  %v149 = vadd.f32 %v54, %v148
  %150 = vmatmul.f32.gmra.mxu0 %v70
  %v151 = vpop.f32.mrf.mxu0
  %v152 = vadd.f32 %v54, %v151
  %153 = vmatmul.f32.gmra.mxu0 %v73
  %v154 = vpop.f32.mrf.mxu0
  %v155 = vadd.f32 %v54, %v154
  %156 = vmatmul.f32.gmra.mxu0 %v76
  %v157 = vpop.f32.mrf.mxu0
  %v158 = vadd.f32 %v54, %v157
  %159 = vmatmul.f32.gmra.mxu0 %v79
  %v160 = vpop.f32.mrf.mxu0
  %v161 = vadd.f32 %v54, %v160
  %162 = vmatmul.f32.gmra.mxu0 %v82
  %v163 = vpop.f32.mrf.mxu0
  %v164 = vadd.f32 %v54, %v163
  %165 = vdwg.mxu0
  %166 = vmatpush.msra.mxu0 0.0
  %167 = vmatpush.msra.mxu0 0.0
  %168 = vmatpush.msra.mxu0 0.0
  %169 = vmatpush.msra.mxu0 0.0
  %170 = vmatpush.msra.mxu0 0.0
  %171 = vmatpush.msra.mxu0 0.0
  %172 = vmatpush.msra.mxu0 0.0
  %173 = vmatpush.msra.mxu0 0.0
  %174 = vmatpush.msra.mxu0 0.0
  %175 = vmatpush.msra.mxu0 0.0
  %176 = vmatpush.msra.mxu0 0.0
  %177 = vmatpush.msra.mxu0 0.0
  %178 = vmatpush.msra.mxu0 %v50
  %179 = vmatpush.msra.mxu0 %v47
  %180 = vmatpush.msra.mxu0 %v44
  %181 = vmatpush.msra.mxu0 %v41
  %182 = vmatmul.f32.gmra.mxu0 %v61
  %v183 = vpop.f32.mrf.mxu0
  %v184 = vadd.f32 %v55, %v183
  %185 = vmatmul.f32.gmra.mxu0 %v64
  %v186 = vpop.f32.mrf.mxu0
  %v187 = vadd.f32 %v55, %v186
  %188 = vmatmul.f32.gmra.mxu0 %v67
  %v189 = vpop.f32.mrf.mxu0
  %v190 = vadd.f32 %v55, %v189
  %191 = vmatmul.f32.gmra.mxu0 %v70
  %v192 = vpop.f32.mrf.mxu0
  %v193 = vadd.f32 %v55, %v192
  %194 = vmatmul.f32.gmra.mxu0 %v73
  %v195 = vpop.f32.mrf.mxu0
  %v196 = vadd.f32 %v55, %v195
  %197 = vmatmul.f32.gmra.mxu0 %v76
  %v198 = vpop.f32.mrf.mxu0
  %v199 = vadd.f32 %v55, %v198
  %200 = vmatmul.f32.gmra.mxu0 %v79
  %v201 = vpop.f32.mrf.mxu0
  %v202 = vadd.f32 %v55, %v201
  %203 = vmatmul.f32.gmra.mxu0 %v82
  %v204 = vpop.f32.mrf.mxu0
  %v205 = vadd.f32 %v55, %v204
  %206 = vdwg.mxu0
  %207 = vst [vmem:[#allocation2] sm:$0xff] %v102
  %208 = vst [vmem:[#allocation2 + $0x8] sm:$0xff] %v143
  %209 = vst [vmem:[#allocation2 + $0x10] sm:$0xff] %v184
  %210 = vst [vmem:[#allocation2 + $0x18] sm:$0xff] %v105
  %211 = vst [vmem:[#allocation2 + $0x20] sm:$0xff] %v146
  %212 = vst [vmem:[#allocation2 + $0x28] sm:$0xff] %v187
  %213 = vst [vmem:[#allocation2 + $0x30] sm:$0xff] %v108
  %214 = vst [vmem:[#allocation2 + $0x38] sm:$0xff] %v149
  %215 = vst [vmem:[#allocation2 + $0x40] sm:$0xff] %v190
  %216 = vst [vmem:[#allocation2 + $0x48] sm:$0xff] %v111
  %217 = vst [vmem:[#allocation2 + $0x50] sm:$0xff] %v152
  %218 = vst [vmem:[#allocation2 + $0x58] sm:$0xff] %v193
  %219 = vst [vmem:[#allocation2 + $0x60] sm:$0xff] %v114
  %220 = vst [vmem:[#allocation2 + $0x68] sm:$0xff] %v155
  %221 = vst [vmem:[#allocation2 + $0x70] sm:$0xff] %v196
  %222 = vst [vmem:[#allocation2 + $0x78] sm:$0xff] %v117
  %223 = vst [vmem:[#allocation2 + $0x80] sm:$0xff] %v158
  %224 = vst [vmem:[#allocation2 + $0x88] sm:$0xff] %v199
  %225 = vst [vmem:[#allocation2 + $0x90] sm:$0xff] %v120
  %226 = vst [vmem:[#allocation2 + $0x98] sm:$0xff] %v161
  %227 = vst [vmem:[#allocation2 + $0xa0] sm:$0xff] %v202
  %228 = vst [vmem:[#allocation2 + $0xa8] sm:$0xff] %v123
  %229 = vst [vmem:[#allocation2 + $0xb0] sm:$0xff] %v164
  %230 = vst [vmem:[#allocation2 + $0xb8] sm:$0xff] %v205
  %v231 = vld [vmem:[%s3] sm:$0xff]
  %v232 = vld [vmem:[%s3 + $0x8] sm:$0xff]
  %v233 = vld [vmem:[%s3 + $0x10] sm:$0xff]
  %v234 = vld [vmem:[%s3 + $0x18] sm:$0xff]
  %v235 = vld [vmem:[%s3 + $0x20] sm:$0xff]
  %v236 = vld [vmem:[%s3 + $0x28] sm:$0xff]
  %v237 = vld [vmem:[%s3 + $0x30] sm:$0xff]
  %v238 = vld [vmem:[%s3 + $0x38] sm:$0xff]
  %v239 = vld [vmem:[%s3 + $0x40] sm:$0xff]
  %v240 = vld [vmem:[%s3 + $0x48] sm:$0xff]
  %v241 = vld [vmem:[%s3 + $0x50] sm:$0xff]
  %v242 = vld [vmem:[%s3 + $0x58] sm:$0xff]
  %v243 = vld [vmem:[%s3 + $0x60] sm:$0xff]
  %v244 = vld [vmem:[%s3 + $0x68] sm:$0xff]
  %v245 = vld [vmem:[%s3 + $0x70] sm:$0xff]
  %v246 = vld [vmem:[%s3 + $0x78] sm:$0xff]
  %v247 = vld [vmem:[%s3 + $0x80] sm:$0xff]
  %v248 = vld [vmem:[%s3 + $0x88] sm:$0xff]
  %v249 = vld [vmem:[%s3 + $0x90] sm:$0xff]
  %v250 = vld [vmem:[%s3 + $0x98] sm:$0xff]
  %v251 = vld [vmem:[%s3 + $0xa0] sm:$0xff]
  %v252 = vld [vmem:[%s3 + $0xa8] sm:$0xff]
  %v253 = vld [vmem:[%s3 + $0xb0] sm:$0xff]
  %v254 = vld [vmem:[%s3 + $0xb8] sm:$0xff]
  %v255 = vld [vmem:[%s3 + $0xc0] sm:$0xff]
  %v256 = vld [vmem:[%s3 + $0xc8] sm:$0xff]
  %v257 = vld [vmem:[%s3 + $0xd0] sm:$0xff]
  %v258 = vld [vmem:[%s3 + $0xd8] sm:$0xff]
  %v259 = vld [vmem:[%s3 + $0xe0] sm:$0xff]
  %v260 = vld [vmem:[%s3 + $0xe8] sm:$0xff]
  %v261 = vld [vmem:[%s3 + $0xf0] sm:$0xff]
  %v262 = vld [vmem:[%s3 + $0xf8] sm:$0xff]
  %v263 = vld [vmem:[%s3 + $0x100] sm:$0xff]
  %v264 = vld [vmem:[%s3 + $0x108] sm:$0xff]
  %v265 = vld [vmem:[%s3 + $0x110] sm:$0xff]
  %v266 = vld [vmem:[%s3 + $0x118] sm:$0xff]
  %v267 = vld [vmem:[%s3 + $0x120] sm:$0xff]
  %v268 = vld [vmem:[%s3 + $0x128] sm:$0xff]
  %v269 = vld [vmem:[%s3 + $0x130] sm:$0xff]
  %v270 = vld [vmem:[%s3 + $0x138] sm:$0xff]
  %v271 = vld [vmem:[%s3 + $0x140] sm:$0xff]
  %v272 = vld [vmem:[%s3 + $0x148] sm:$0xff]
  %v273 = vld [vmem:[%s3 + $0x150] sm:$0xff]
  %v274 = vld [vmem:[%s3 + $0x158] sm:$0xff]
  %v275 = vld [vmem:[%s3 + $0x160] sm:$0xff]
  %v276 = vld [vmem:[%s3 + $0x168] sm:$0xff]
  %v277 = vld [vmem:[%s3 + $0x170] sm:$0xff]
  %v278 = vld [vmem:[%s3 + $0x178] sm:$0xff]
  %v279 = vld [vmem:[%s5] sm:$0x1]
  %v281 = vperm.slane %v279, 0
  %v283 = vld [vmem:[%s1] sm:$0xff]
  %s284 = smul.u32 0, 3
  %s285 = smul.addr %s284, 8
  %s286 = scalar_lea.vmem [#allocation2], %s285
  %v287 = vld [vmem:[%s286] sm:$0xff]
  %v288 = vld [vmem:[%s286 + $0x8] sm:$0xff]
  %v289 = vld [vmem:[%s286 + $0x10] sm:$0xff]
  %290 = vmatpush.msra.mxu0 %v276
  %291 = vmatpush.msra.mxu0 %v273
  %292 = vmatpush.msra.mxu0 %v270
  %293 = vmatpush.msra.mxu0 %v267
  %294 = vmatpush.msra.mxu0 %v264
  %295 = vmatpush.msra.mxu0 %v261
  %296 = vmatpush.msra.mxu0 %v258
  %297 = vmatpush.msra.mxu0 %v255
  %298 = vmatpush.msra.mxu0 %v252
  %299 = vmatpush.msra.mxu0 %v249
  %300 = vmatpush.msra.mxu0 %v246
  %301 = vmatpush.msra.mxu0 %v243
  %302 = vmatpush.msra.mxu0 %v240
  %303 = vmatpush.msra.mxu0 %v237
  %304 = vmatpush.msra.mxu0 %v234
  %305 = vmatpush.msra.mxu0 %v231
  %306 = vmatmul.f32.gmra.mxu0 %v283
  %v307 = vpop.f32.mrf.mxu0
  %v308 = vadd.f32 0.0, %v307
  %309 = vdwg.mxu0
  %310 = vmatpush.msra.mxu0 %v277
  %311 = vmatpush.msra.mxu0 %v274
  %312 = vmatpush.msra.mxu0 %v271
  %313 = vmatpush.msra.mxu0 %v268
  %314 = vmatpush.msra.mxu0 %v265
  %315 = vmatpush.msra.mxu0 %v262
  %316 = vmatpush.msra.mxu0 %v259
  %317 = vmatpush.msra.mxu0 %v256
  %318 = vmatpush.msra.mxu0 %v253
  %319 = vmatpush.msra.mxu0 %v250
  %320 = vmatpush.msra.mxu0 %v247
  %321 = vmatpush.msra.mxu0 %v244
  %322 = vmatpush.msra.mxu0 %v241
  %323 = vmatpush.msra.mxu0 %v238
  %324 = vmatpush.msra.mxu0 %v235
  %325 = vmatpush.msra.mxu0 %v232
  %326 = vmatmul.f32.gmra.mxu0 %v283
  %v327 = vpop.f32.mrf.mxu0
  %v328 = vadd.f32 0.0, %v327
  %329 = vdwg.mxu0
  %330 = vmatpush.msra.mxu0 %v278
  %331 = vmatpush.msra.mxu0 %v275
  %332 = vmatpush.msra.mxu0 %v272
  %333 = vmatpush.msra.mxu0 %v269
  %334 = vmatpush.msra.mxu0 %v266
  %335 = vmatpush.msra.mxu0 %v263
  %336 = vmatpush.msra.mxu0 %v260
  %337 = vmatpush.msra.mxu0 %v257
  %338 = vmatpush.msra.mxu0 %v254
  %339 = vmatpush.msra.mxu0 %v251
  %340 = vmatpush.msra.mxu0 %v248
  %341 = vmatpush.msra.mxu0 %v245
  %342 = vmatpush.msra.mxu0 %v242
  %343 = vmatpush.msra.mxu0 %v239
  %344 = vmatpush.msra.mxu0 %v236
  %345 = vmatpush.msra.mxu0 %v233
  %346 = vmatmul.f32.gmra.mxu0 %v283
  %v347 = vpop.f32.mrf.mxu0
  %v348 = vadd.f32 0.0, %v347
  %349 = vdwg.mxu0
  %v350 = vadd.f32 %v287, %v308
  %v351 = vxor.u32 %v350, 2147483648
  %v352 = vmul.f32 %v351, 1.442695
  %v353 = vpow.pop %v352
  %v354 = vadd.f32 %v353, 1.0
  %v355 = vrcp.pop %v354
  %v356 = vmul.f32 %v354, %v355
  %v357 = vsub.f32 1.0, %v356
  %v358 = vmul.f32 %v355, %v357
  %v359 = vadd.f32 %v355, %v358
  %vm360 = vweird.f32 %v354
  %vm361 = vweird.f32 %v355
  %vm362 = vmor %vm360, %vm361
  %v363 = vsel %vm362, %v355, %v359
  %v364 = vand.u32 2147483647, %v354
  %vm365 = vcmp.eq.f32.partialorder %v364, 8.507059e+37
  %v366 = vand.u32 %v354, 2147483648
  %v367 = vor.u32 1.1754944e-38, %v366
  %v368 = vsel %vm365, %v367, %v363
  %v369 = vmul.f32 1.0, %v368
  %v370 = vadd.f32 %v288, %v328
  %v371 = vxor.u32 %v370, 2147483648
  %v372 = vmul.f32 %v371, 1.442695
  %v373 = vpow.pop %v372
  %v374 = vadd.f32 %v373, 1.0
  %v375 = vrcp.pop %v374
  %v376 = vmul.f32 %v374, %v375
  %v377 = vsub.f32 1.0, %v376
  %v378 = vmul.f32 %v375, %v377
  %v379 = vadd.f32 %v375, %v378
  %vm380 = vweird.f32 %v374
  %vm381 = vweird.f32 %v375
  %vm382 = vmor %vm380, %vm381
  %v383 = vsel %vm382, %v375, %v379
  %v384 = vand.u32 2147483647, %v374
  %vm385 = vcmp.eq.f32.partialorder %v384, 8.507059e+37
  %v386 = vand.u32 %v374, 2147483648
  %v387 = vor.u32 1.1754944e-38, %v386
  %v388 = vsel %vm385, %v387, %v383
  %v389 = vmul.f32 1.0, %v388
  %v390 = vadd.f32 %v348, %v281
  %v391 = vmul.f32 %v369, %v390
  %v392 = vadd.f32 %v289, %v391
  %v393 = vtanh.pop %v392
  %v394 = vsub.f32 1.0, %v389
  %v395 = vmul.f32 %v394, %v393
  %v396 = vmul.f32 %v389, %v283
  %v397 = vadd.f32 %v395, %v396
  %398 = vst [vmem:[#allocation3] sm:$0xff] %v397
  %s399 = smul.u32 1, 3
  %s400 = smul.addr %s399, 8
  %s401 = scalar_lea.vmem [#allocation2], %s400
  %v402 = vld [vmem:[%s401] sm:$0xff]
  %v403 = vld [vmem:[%s401 + $0x8] sm:$0xff]
  %v404 = vld [vmem:[%s401 + $0x10] sm:$0xff]
  %405 = vmatpush.msra.mxu0 %v276
  %406 = vmatpush.msra.mxu0 %v273
  %407 = vmatpush.msra.mxu0 %v270
  %408 = vmatpush.msra.mxu0 %v267
  %409 = vmatpush.msra.mxu0 %v264
  %410 = vmatpush.msra.mxu0 %v261
  %411 = vmatpush.msra.mxu0 %v258
  %412 = vmatpush.msra.mxu0 %v255
  %413 = vmatpush.msra.mxu0 %v252
  %414 = vmatpush.msra.mxu0 %v249
  %415 = vmatpush.msra.mxu0 %v246
  %416 = vmatpush.msra.mxu0 %v243
  %417 = vmatpush.msra.mxu0 %v240
  %418 = vmatpush.msra.mxu0 %v237
  %419 = vmatpush.msra.mxu0 %v234
  %420 = vmatpush.msra.mxu0 %v231
  %421 = vmatmul.f32.gmra.mxu0 %v397
  %v422 = vpop.f32.mrf.mxu0
  %v423 = vadd.f32 0.0, %v422
  %424 = vdwg.mxu0
  %425 = vmatpush.msra.mxu0 %v277
  %426 = vmatpush.msra.mxu0 %v274
  %427 = vmatpush.msra.mxu0 %v271
  %428 = vmatpush.msra.mxu0 %v268
  %429 = vmatpush.msra.mxu0 %v265
  %430 = vmatpush.msra.mxu0 %v262
  %431 = vmatpush.msra.mxu0 %v259
  %432 = vmatpush.msra.mxu0 %v256
  %433 = vmatpush.msra.mxu0 %v253
  %434 = vmatpush.msra.mxu0 %v250
  %435 = vmatpush.msra.mxu0 %v247
  %436 = vmatpush.msra.mxu0 %v244
  %437 = vmatpush.msra.mxu0 %v241
  %438 = vmatpush.msra.mxu0 %v238
  %439 = vmatpush.msra.mxu0 %v235
  %440 = vmatpush.msra.mxu0 %v232
  %441 = vmatmul.f32.gmra.mxu0 %v397
  %v442 = vpop.f32.mrf.mxu0
  %v443 = vadd.f32 0.0, %v442
  %444 = vdwg.mxu0
  %445 = vmatpush.msra.mxu0 %v278
  %446 = vmatpush.msra.mxu0 %v275
  %447 = vmatpush.msra.mxu0 %v272
  %448 = vmatpush.msra.mxu0 %v269
  %449 = vmatpush.msra.mxu0 %v266
  %450 = vmatpush.msra.mxu0 %v263
  %451 = vmatpush.msra.mxu0 %v260
  %452 = vmatpush.msra.mxu0 %v257
  %453 = vmatpush.msra.mxu0 %v254
  %454 = vmatpush.msra.mxu0 %v251
  %455 = vmatpush.msra.mxu0 %v248
  %456 = vmatpush.msra.mxu0 %v245
  %457 = vmatpush.msra.mxu0 %v242
  %458 = vmatpush.msra.mxu0 %v239
  %459 = vmatpush.msra.mxu0 %v236
  %460 = vmatpush.msra.mxu0 %v233
  %461 = vmatmul.f32.gmra.mxu0 %v397
  %v462 = vpop.f32.mrf.mxu0
  %v463 = vadd.f32 0.0, %v462
  %464 = vdwg.mxu0
  %v465 = vadd.f32 %v402, %v423
  %v466 = vxor.u32 %v465, 2147483648
  %v467 = vmul.f32 %v466, 1.442695
  %v468 = vpow.pop %v467
  %v469 = vadd.f32 %v468, 1.0
  %v470 = vrcp.pop %v469
  %v471 = vmul.f32 %v469, %v470
  %v472 = vsub.f32 1.0, %v471
  %v473 = vmul.f32 %v470, %v472
  %v474 = vadd.f32 %v470, %v473
  %vm475 = vweird.f32 %v469
  %vm476 = vweird.f32 %v470
  %vm477 = vmor %vm475, %vm476
  %v478 = vsel %vm477, %v470, %v474
  %v479 = vand.u32 2147483647, %v469
  %vm480 = vcmp.eq.f32.partialorder %v479, 8.507059e+37
  %v481 = vand.u32 %v469, 2147483648
  %v482 = vor.u32 1.1754944e-38, %v481
  %v483 = vsel %vm480, %v482, %v478
  %v484 = vmul.f32 1.0, %v483
  %v485 = vadd.f32 %v403, %v443
  %v486 = vxor.u32 %v485, 2147483648
  %v487 = vmul.f32 %v486, 1.442695
  %v488 = vpow.pop %v487
  %v489 = vadd.f32 %v488, 1.0
  %v490 = vrcp.pop %v489
  %v491 = vmul.f32 %v489, %v490
  %v492 = vsub.f32 1.0, %v491
  %v493 = vmul.f32 %v490, %v492
  %v494 = vadd.f32 %v490, %v493
  %vm495 = vweird.f32 %v489
  %vm496 = vweird.f32 %v490
  %vm497 = vmor %vm495, %vm496
  %v498 = vsel %vm497, %v490, %v494
  %v499 = vand.u32 2147483647, %v489
  %vm500 = vcmp.eq.f32.partialorder %v499, 8.507059e+37
  %v501 = vand.u32 %v489, 2147483648
  %v502 = vor.u32 1.1754944e-38, %v501
  %v503 = vsel %vm500, %v502, %v498
  %v504 = vmul.f32 1.0, %v503
  %v505 = vadd.f32 %v463, %v281
  %v506 = vmul.f32 %v484, %v505
  %v507 = vadd.f32 %v404, %v506
  %v508 = vtanh.pop %v507
  %v509 = vsub.f32 1.0, %v504
  %v510 = vmul.f32 %v509, %v508
  %v511 = vmul.f32 %v504, %v397
  %v512 = vadd.f32 %v510, %v511
  %s513 = scalar_lea.vmem [#allocation3], 8
  %514 = vst [vmem:[%s513] sm:$0xff] %v512
  %s515 = smul.u32 2, 3
  %s516 = smul.addr %s515, 8
  %s517 = scalar_lea.vmem [#allocation2], %s516
  %v518 = vld [vmem:[%s517] sm:$0xff]
  %v519 = vld [vmem:[%s517 + $0x8] sm:$0xff]
  %v520 = vld [vmem:[%s517 + $0x10] sm:$0xff]
  %521 = vmatpush.msra.mxu0 %v276
  %522 = vmatpush.msra.mxu0 %v273
  %523 = vmatpush.msra.mxu0 %v270
  %524 = vmatpush.msra.mxu0 %v267
  %525 = vmatpush.msra.mxu0 %v264
  %526 = vmatpush.msra.mxu0 %v261
  %527 = vmatpush.msra.mxu0 %v258
  %528 = vmatpush.msra.mxu0 %v255
  %529 = vmatpush.msra.mxu0 %v252
  %530 = vmatpush.msra.mxu0 %v249
  %531 = vmatpush.msra.mxu0 %v246
  %532 = vmatpush.msra.mxu0 %v243
  %533 = vmatpush.msra.mxu0 %v240
  %534 = vmatpush.msra.mxu0 %v237
  %535 = vmatpush.msra.mxu0 %v234
  %536 = vmatpush.msra.mxu0 %v231
  %537 = vmatmul.f32.gmra.mxu0 %v512
  %v538 = vpop.f32.mrf.mxu0
  %v539 = vadd.f32 0.0, %v538
  %540 = vdwg.mxu0
  %541 = vmatpush.msra.mxu0 %v277
  %542 = vmatpush.msra.mxu0 %v274
  %543 = vmatpush.msra.mxu0 %v271
  %544 = vmatpush.msra.mxu0 %v268
  %545 = vmatpush.msra.mxu0 %v265
  %546 = vmatpush.msra.mxu0 %v262
  %547 = vmatpush.msra.mxu0 %v259
  %548 = vmatpush.msra.mxu0 %v256
  %549 = vmatpush.msra.mxu0 %v253
  %550 = vmatpush.msra.mxu0 %v250
  %551 = vmatpush.msra.mxu0 %v247
  %552 = vmatpush.msra.mxu0 %v244
  %553 = vmatpush.msra.mxu0 %v241
  %554 = vmatpush.msra.mxu0 %v238
  %555 = vmatpush.msra.mxu0 %v235
  %556 = vmatpush.msra.mxu0 %v232
  %557 = vmatmul.f32.gmra.mxu0 %v512
  %v558 = vpop.f32.mrf.mxu0
  %v559 = vadd.f32 0.0, %v558
  %560 = vdwg.mxu0
  %561 = vmatpush.msra.mxu0 %v278
  %562 = vmatpush.msra.mxu0 %v275
  %563 = vmatpush.msra.mxu0 %v272
  %564 = vmatpush.msra.mxu0 %v269
  %565 = vmatpush.msra.mxu0 %v266
  %566 = vmatpush.msra.mxu0 %v263
  %567 = vmatpush.msra.mxu0 %v260
  %568 = vmatpush.msra.mxu0 %v257
  %569 = vmatpush.msra.mxu0 %v254
  %570 = vmatpush.msra.mxu0 %v251
  %571 = vmatpush.msra.mxu0 %v248
  %572 = vmatpush.msra.mxu0 %v245
  %573 = vmatpush.msra.mxu0 %v242
  %574 = vmatpush.msra.mxu0 %v239
  %575 = vmatpush.msra.mxu0 %v236
  %576 = vmatpush.msra.mxu0 %v233
  %577 = vmatmul.f32.gmra.mxu0 %v512
  %v578 = vpop.f32.mrf.mxu0
  %v579 = vadd.f32 0.0, %v578
  %580 = vdwg.mxu0
  %v581 = vadd.f32 %v518, %v539
  %v582 = vxor.u32 %v581, 2147483648
  %v583 = vmul.f32 %v582, 1.442695
  %v584 = vpow.pop %v583
  %v585 = vadd.f32 %v584, 1.0
  %v586 = vrcp.pop %v585
  %v587 = vmul.f32 %v585, %v586
  %v588 = vsub.f32 1.0, %v587
  %v589 = vmul.f32 %v586, %v588
  %v590 = vadd.f32 %v586, %v589
  %vm591 = vweird.f32 %v585
  %vm592 = vweird.f32 %v586
  %vm593 = vmor %vm591, %vm592
  %v594 = vsel %vm593, %v586, %v590
  %v595 = vand.u32 2147483647, %v585
  %vm596 = vcmp.eq.f32.partialorder %v595, 8.507059e+37
  %v597 = vand.u32 %v585, 2147483648
  %v598 = vor.u32 1.1754944e-38, %v597
  %v599 = vsel %vm596, %v598, %v594
  %v600 = vmul.f32 1.0, %v599
  %v601 = vadd.f32 %v519, %v559
  %v602 = vxor.u32 %v601, 2147483648
  %v603 = vmul.f32 %v602, 1.442695
  %v604 = vpow.pop %v603
  %v605 = vadd.f32 %v604, 1.0
  %v606 = vrcp.pop %v605
  %v607 = vmul.f32 %v605, %v606
  %v608 = vsub.f32 1.0, %v607
  %v609 = vmul.f32 %v606, %v608
  %v610 = vadd.f32 %v606, %v609
  %vm611 = vweird.f32 %v605
  %vm612 = vweird.f32 %v606
  %vm613 = vmor %vm611, %vm612
  %v614 = vsel %vm613, %v606, %v610
  %v615 = vand.u32 2147483647, %v605
  %vm616 = vcmp.eq.f32.partialorder %v615, 8.507059e+37
  %v617 = vand.u32 %v605, 2147483648
  %v618 = vor.u32 1.1754944e-38, %v617
  %v619 = vsel %vm616, %v618, %v614
  %v620 = vmul.f32 1.0, %v619
  %v621 = vadd.f32 %v579, %v281
  %v622 = vmul.f32 %v600, %v621
  %v623 = vadd.f32 %v520, %v622
  %v624 = vtanh.pop %v623
  %v625 = vsub.f32 1.0, %v620
  %v626 = vmul.f32 %v625, %v624
  %v627 = vmul.f32 %v620, %v512
  %v628 = vadd.f32 %v626, %v627
  %s629 = scalar_lea.vmem [#allocation3], 16
  %630 = vst [vmem:[%s629] sm:$0xff] %v628
  %s631 = smul.u32 3, 3
  %s632 = smul.addr %s631, 8
  %s633 = scalar_lea.vmem [#allocation2], %s632
  %v634 = vld [vmem:[%s633] sm:$0xff]
  %v635 = vld [vmem:[%s633 + $0x8] sm:$0xff]
  %v636 = vld [vmem:[%s633 + $0x10] sm:$0xff]
  %637 = vmatpush.msra.mxu0 %v276
  %638 = vmatpush.msra.mxu0 %v273
  %639 = vmatpush.msra.mxu0 %v270
  %640 = vmatpush.msra.mxu0 %v267
  %641 = vmatpush.msra.mxu0 %v264
  %642 = vmatpush.msra.mxu0 %v261
  %643 = vmatpush.msra.mxu0 %v258
  %644 = vmatpush.msra.mxu0 %v255
  %645 = vmatpush.msra.mxu0 %v252
  %646 = vmatpush.msra.mxu0 %v249
  %647 = vmatpush.msra.mxu0 %v246
  %648 = vmatpush.msra.mxu0 %v243
  %649 = vmatpush.msra.mxu0 %v240
  %650 = vmatpush.msra.mxu0 %v237
  %651 = vmatpush.msra.mxu0 %v234
  %652 = vmatpush.msra.mxu0 %v231
  %653 = vmatmul.f32.gmra.mxu0 %v628
  %v654 = vpop.f32.mrf.mxu0
  %v655 = vadd.f32 0.0, %v654
  %656 = vdwg.mxu0
  %657 = vmatpush.msra.mxu0 %v277
  %658 = vmatpush.msra.mxu0 %v274
  %659 = vmatpush.msra.mxu0 %v271
  %660 = vmatpush.msra.mxu0 %v268
  %661 = vmatpush.msra.mxu0 %v265
  %662 = vmatpush.msra.mxu0 %v262
  %663 = vmatpush.msra.mxu0 %v259
  %664 = vmatpush.msra.mxu0 %v256
  %665 = vmatpush.msra.mxu0 %v253
  %666 = vmatpush.msra.mxu0 %v250
  %667 = vmatpush.msra.mxu0 %v247
  %668 = vmatpush.msra.mxu0 %v244
  %669 = vmatpush.msra.mxu0 %v241
  %670 = vmatpush.msra.mxu0 %v238
  %671 = vmatpush.msra.mxu0 %v235
  %672 = vmatpush.msra.mxu0 %v232
  %673 = vmatmul.f32.gmra.mxu0 %v628
  %v674 = vpop.f32.mrf.mxu0
  %v675 = vadd.f32 0.0, %v674
  %676 = vdwg.mxu0
  %677 = vmatpush.msra.mxu0 %v278
  %678 = vmatpush.msra.mxu0 %v275
  %679 = vmatpush.msra.mxu0 %v272
  %680 = vmatpush.msra.mxu0 %v269
  %681 = vmatpush.msra.mxu0 %v266
  %682 = vmatpush.msra.mxu0 %v263
  %683 = vmatpush.msra.mxu0 %v260
  %684 = vmatpush.msra.mxu0 %v257
  %685 = vmatpush.msra.mxu0 %v254
  %686 = vmatpush.msra.mxu0 %v251
  %687 = vmatpush.msra.mxu0 %v248
  %688 = vmatpush.msra.mxu0 %v245
  %689 = vmatpush.msra.mxu0 %v242
  %690 = vmatpush.msra.mxu0 %v239
  %691 = vmatpush.msra.mxu0 %v236
  %692 = vmatpush.msra.mxu0 %v233
  %693 = vmatmul.f32.gmra.mxu0 %v628
  %v694 = vpop.f32.mrf.mxu0
  %v695 = vadd.f32 0.0, %v694
  %696 = vdwg.mxu0
  %v697 = vadd.f32 %v634, %v655
  %v698 = vxor.u32 %v697, 2147483648
  %v699 = vmul.f32 %v698, 1.442695
  %v700 = vpow.pop %v699
  %v701 = vadd.f32 %v700, 1.0
  %v702 = vrcp.pop %v701
  %v703 = vmul.f32 %v701, %v702
  %v704 = vsub.f32 1.0, %v703
  %v705 = vmul.f32 %v702, %v704
  %v706 = vadd.f32 %v702, %v705
  %vm707 = vweird.f32 %v701
  %vm708 = vweird.f32 %v702
  %vm709 = vmor %vm707, %vm708
  %v710 = vsel %vm709, %v702, %v706
  %v711 = vand.u32 2147483647, %v701
  %vm712 = vcmp.eq.f32.partialorder %v711, 8.507059e+37
  %v713 = vand.u32 %v701, 2147483648
  %v714 = vor.u32 1.1754944e-38, %v713
  %v715 = vsel %vm712, %v714, %v710
  %v716 = vmul.f32 1.0, %v715
  %v717 = vadd.f32 %v635, %v675
  %v718 = vxor.u32 %v717, 2147483648
  %v719 = vmul.f32 %v718, 1.442695
  %v720 = vpow.pop %v719
  %v721 = vadd.f32 %v720, 1.0
  %v722 = vrcp.pop %v721
  %v723 = vmul.f32 %v721, %v722
  %v724 = vsub.f32 1.0, %v723
  %v725 = vmul.f32 %v722, %v724
  %v726 = vadd.f32 %v722, %v725
  %vm727 = vweird.f32 %v721
  %vm728 = vweird.f32 %v722
  %vm729 = vmor %vm727, %vm728
  %v730 = vsel %vm729, %v722, %v726
  %v731 = vand.u32 2147483647, %v721
  %vm732 = vcmp.eq.f32.partialorder %v731, 8.507059e+37
  %v733 = vand.u32 %v721, 2147483648
  %v734 = vor.u32 1.1754944e-38, %v733
  %v735 = vsel %vm732, %v734, %v730
  %v736 = vmul.f32 1.0, %v735
  %v737 = vadd.f32 %v695, %v281
  %v738 = vmul.f32 %v716, %v737
  %v739 = vadd.f32 %v636, %v738
  %v740 = vtanh.pop %v739
  %v741 = vsub.f32 1.0, %v736
  %v742 = vmul.f32 %v741, %v740
  %v743 = vmul.f32 %v736, %v628
  %v744 = vadd.f32 %v742, %v743
  %s745 = scalar_lea.vmem [#allocation3], 24
  %746 = vst [vmem:[%s745] sm:$0xff] %v744
  %s747 = smul.u32 4, 3
  %s748 = smul.addr %s747, 8
  %s749 = scalar_lea.vmem [#allocation2], %s748
  %v750 = vld [vmem:[%s749] sm:$0xff]
  %v751 = vld [vmem:[%s749 + $0x8] sm:$0xff]
  %v752 = vld [vmem:[%s749 + $0x10] sm:$0xff]
  %753 = vmatpush.msra.mxu0 %v276
  %754 = vmatpush.msra.mxu0 %v273
  %755 = vmatpush.msra.mxu0 %v270
  %756 = vmatpush.msra.mxu0 %v267
  %757 = vmatpush.msra.mxu0 %v264
  %758 = vmatpush.msra.mxu0 %v261
  %759 = vmatpush.msra.mxu0 %v258
  %760 = vmatpush.msra.mxu0 %v255
  %761 = vmatpush.msra.mxu0 %v252
  %762 = vmatpush.msra.mxu0 %v249
  %763 = vmatpush.msra.mxu0 %v246
  %764 = vmatpush.msra.mxu0 %v243
  %765 = vmatpush.msra.mxu0 %v240
  %766 = vmatpush.msra.mxu0 %v237
  %767 = vmatpush.msra.mxu0 %v234
  %768 = vmatpush.msra.mxu0 %v231
  %769 = vmatmul.f32.gmra.mxu0 %v744
  %v770 = vpop.f32.mrf.mxu0
  %v771 = vadd.f32 0.0, %v770
  %772 = vdwg.mxu0
  %773 = vmatpush.msra.mxu0 %v277
  %774 = vmatpush.msra.mxu0 %v274
  %775 = vmatpush.msra.mxu0 %v271
  %776 = vmatpush.msra.mxu0 %v268
  %777 = vmatpush.msra.mxu0 %v265
  %778 = vmatpush.msra.mxu0 %v262
  %779 = vmatpush.msra.mxu0 %v259
  %780 = vmatpush.msra.mxu0 %v256
  %781 = vmatpush.msra.mxu0 %v253
  %782 = vmatpush.msra.mxu0 %v250
  %783 = vmatpush.msra.mxu0 %v247
  %784 = vmatpush.msra.mxu0 %v244
  %785 = vmatpush.msra.mxu0 %v241
  %786 = vmatpush.msra.mxu0 %v238
  %787 = vmatpush.msra.mxu0 %v235
  %788 = vmatpush.msra.mxu0 %v232
  %789 = vmatmul.f32.gmra.mxu0 %v744
  %v790 = vpop.f32.mrf.mxu0
  %v791 = vadd.f32 0.0, %v790
  %792 = vdwg.mxu0
  %793 = vmatpush.msra.mxu0 %v278
  %794 = vmatpush.msra.mxu0 %v275
  %795 = vmatpush.msra.mxu0 %v272
  %796 = vmatpush.msra.mxu0 %v269
  %797 = vmatpush.msra.mxu0 %v266
  %798 = vmatpush.msra.mxu0 %v263
  %799 = vmatpush.msra.mxu0 %v260
  %800 = vmatpush.msra.mxu0 %v257
  %801 = vmatpush.msra.mxu0 %v254
  %802 = vmatpush.msra.mxu0 %v251
  %803 = vmatpush.msra.mxu0 %v248
  %804 = vmatpush.msra.mxu0 %v245
  %805 = vmatpush.msra.mxu0 %v242
  %806 = vmatpush.msra.mxu0 %v239
  %807 = vmatpush.msra.mxu0 %v236
  %808 = vmatpush.msra.mxu0 %v233
  %809 = vmatmul.f32.gmra.mxu0 %v744
  %v810 = vpop.f32.mrf.mxu0
  %v811 = vadd.f32 0.0, %v810
  %812 = vdwg.mxu0
  %v813 = vadd.f32 %v750, %v771
  %v814 = vxor.u32 %v813, 2147483648
  %v815 = vmul.f32 %v814, 1.442695
  %v816 = vpow.pop %v815
  %v817 = vadd.f32 %v816, 1.0
  %v818 = vrcp.pop %v817
  %v819 = vmul.f32 %v817, %v818
  %v820 = vsub.f32 1.0, %v819
  %v821 = vmul.f32 %v818, %v820
  %v822 = vadd.f32 %v818, %v821
  %vm823 = vweird.f32 %v817
  %vm824 = vweird.f32 %v818
  %vm825 = vmor %vm823, %vm824
  %v826 = vsel %vm825, %v818, %v822
  %v827 = vand.u32 2147483647, %v817
  %vm828 = vcmp.eq.f32.partialorder %v827, 8.507059e+37
  %v829 = vand.u32 %v817, 2147483648
  %v830 = vor.u32 1.1754944e-38, %v829
  %v831 = vsel %vm828, %v830, %v826
  %v832 = vmul.f32 1.0, %v831
  %v833 = vadd.f32 %v751, %v791
  %v834 = vxor.u32 %v833, 2147483648
  %v835 = vmul.f32 %v834, 1.442695
  %v836 = vpow.pop %v835
  %v837 = vadd.f32 %v836, 1.0
  %v838 = vrcp.pop %v837
  %v839 = vmul.f32 %v837, %v838
  %v840 = vsub.f32 1.0, %v839
  %v841 = vmul.f32 %v838, %v840
  %v842 = vadd.f32 %v838, %v841
  %vm843 = vweird.f32 %v837
  %vm844 = vweird.f32 %v838
  %vm845 = vmor %vm843, %vm844
  %v846 = vsel %vm845, %v838, %v842
  %v847 = vand.u32 2147483647, %v837
  %vm848 = vcmp.eq.f32.partialorder %v847, 8.507059e+37
  %v849 = vand.u32 %v837, 2147483648
  %v850 = vor.u32 1.1754944e-38, %v849
  %v851 = vsel %vm848, %v850, %v846
  %v852 = vmul.f32 1.0, %v851
  %v853 = vadd.f32 %v811, %v281
  %v854 = vmul.f32 %v832, %v853
  %v855 = vadd.f32 %v752, %v854
  %v856 = vtanh.pop %v855
  %v857 = vsub.f32 1.0, %v852
  %v858 = vmul.f32 %v857, %v856
  %v859 = vmul.f32 %v852, %v744
  %v860 = vadd.f32 %v858, %v859
  %s861 = scalar_lea.vmem [#allocation3], 32
  %862 = vst [vmem:[%s861] sm:$0xff] %v860
  %s863 = smul.u32 5, 3
  %s864 = smul.addr %s863, 8
  %s865 = scalar_lea.vmem [#allocation2], %s864
  %v866 = vld [vmem:[%s865] sm:$0xff]
  %v867 = vld [vmem:[%s865 + $0x8] sm:$0xff]
  %v868 = vld [vmem:[%s865 + $0x10] sm:$0xff]
  %869 = vmatpush.msra.mxu0 %v276
  %870 = vmatpush.msra.mxu0 %v273
  %871 = vmatpush.msra.mxu0 %v270
  %872 = vmatpush.msra.mxu0 %v267
  %873 = vmatpush.msra.mxu0 %v264
  %874 = vmatpush.msra.mxu0 %v261
  %875 = vmatpush.msra.mxu0 %v258
  %876 = vmatpush.msra.mxu0 %v255
  %877 = vmatpush.msra.mxu0 %v252
  %878 = vmatpush.msra.mxu0 %v249
  %879 = vmatpush.msra.mxu0 %v246
  %880 = vmatpush.msra.mxu0 %v243
  %881 = vmatpush.msra.mxu0 %v240
  %882 = vmatpush.msra.mxu0 %v237
  %883 = vmatpush.msra.mxu0 %v234
  %884 = vmatpush.msra.mxu0 %v231
  %885 = vmatmul.f32.gmra.mxu0 %v860
  %v886 = vpop.f32.mrf.mxu0
  %v887 = vadd.f32 0.0, %v886
  %888 = vdwg.mxu0
  %889 = vmatpush.msra.mxu0 %v277
  %890 = vmatpush.msra.mxu0 %v274
  %891 = vmatpush.msra.mxu0 %v271
  %892 = vmatpush.msra.mxu0 %v268
  %893 = vmatpush.msra.mxu0 %v265
  %894 = vmatpush.msra.mxu0 %v262
  %895 = vmatpush.msra.mxu0 %v259
  %896 = vmatpush.msra.mxu0 %v256
  %897 = vmatpush.msra.mxu0 %v253
  %898 = vmatpush.msra.mxu0 %v250
  %899 = vmatpush.msra.mxu0 %v247
  %900 = vmatpush.msra.mxu0 %v244
  %901 = vmatpush.msra.mxu0 %v241
  %902 = vmatpush.msra.mxu0 %v238
  %903 = vmatpush.msra.mxu0 %v235
  %904 = vmatpush.msra.mxu0 %v232
  %905 = vmatmul.f32.gmra.mxu0 %v860
  %v906 = vpop.f32.mrf.mxu0
  %v907 = vadd.f32 0.0, %v906
  %908 = vdwg.mxu0
  %909 = vmatpush.msra.mxu0 %v278
  %910 = vmatpush.msra.mxu0 %v275
  %911 = vmatpush.msra.mxu0 %v272
  %912 = vmatpush.msra.mxu0 %v269
  %913 = vmatpush.msra.mxu0 %v266
  %914 = vmatpush.msra.mxu0 %v263
  %915 = vmatpush.msra.mxu0 %v260
  %916 = vmatpush.msra.mxu0 %v257
  %917 = vmatpush.msra.mxu0 %v254
  %918 = vmatpush.msra.mxu0 %v251
  %919 = vmatpush.msra.mxu0 %v248
  %920 = vmatpush.msra.mxu0 %v245
  %921 = vmatpush.msra.mxu0 %v242
  %922 = vmatpush.msra.mxu0 %v239
  %923 = vmatpush.msra.mxu0 %v236
  %924 = vmatpush.msra.mxu0 %v233
  %925 = vmatmul.f32.gmra.mxu0 %v860
  %v926 = vpop.f32.mrf.mxu0
  %v927 = vadd.f32 0.0, %v926
  %928 = vdwg.mxu0
  %v929 = vadd.f32 %v866, %v887
  %v930 = vxor.u32 %v929, 2147483648
  %v931 = vmul.f32 %v930, 1.442695
  %v932 = vpow.pop %v931
  %v933 = vadd.f32 %v932, 1.0
  %v934 = vrcp.pop %v933
  %v935 = vmul.f32 %v933, %v934
  %v936 = vsub.f32 1.0, %v935
  %v937 = vmul.f32 %v934, %v936
  %v938 = vadd.f32 %v934, %v937
  %vm939 = vweird.f32 %v933
  %vm940 = vweird.f32 %v934
  %vm941 = vmor %vm939, %vm940
  %v942 = vsel %vm941, %v934, %v938
  %v943 = vand.u32 2147483647, %v933
  %vm944 = vcmp.eq.f32.partialorder %v943, 8.507059e+37
  %v945 = vand.u32 %v933, 2147483648
  %v946 = vor.u32 1.1754944e-38, %v945
  %v947 = vsel %vm944, %v946, %v942
  %v948 = vmul.f32 1.0, %v947
  %v949 = vadd.f32 %v867, %v907
  %v950 = vxor.u32 %v949, 2147483648
  %v951 = vmul.f32 %v950, 1.442695
  %v952 = vpow.pop %v951
  %v953 = vadd.f32 %v952, 1.0
  %v954 = vrcp.pop %v953
  %v955 = vmul.f32 %v953, %v954
  %v956 = vsub.f32 1.0, %v955
  %v957 = vmul.f32 %v954, %v956
  %v958 = vadd.f32 %v954, %v957
  %vm959 = vweird.f32 %v953
  %vm960 = vweird.f32 %v954
  %vm961 = vmor %vm959, %vm960
  %v962 = vsel %vm961, %v954, %v958
  %v963 = vand.u32 2147483647, %v953
  %vm964 = vcmp.eq.f32.partialorder %v963, 8.507059e+37
  %v965 = vand.u32 %v953, 2147483648
  %v966 = vor.u32 1.1754944e-38, %v965
  %v967 = vsel %vm964, %v966, %v962
  %v968 = vmul.f32 1.0, %v967
  %v969 = vadd.f32 %v927, %v281
  %v970 = vmul.f32 %v948, %v969
  %v971 = vadd.f32 %v868, %v970
  %v972 = vtanh.pop %v971
  %v973 = vsub.f32 1.0, %v968
  %v974 = vmul.f32 %v973, %v972
  %v975 = vmul.f32 %v968, %v860
  %v976 = vadd.f32 %v974, %v975
  %s977 = scalar_lea.vmem [#allocation3], 40
  %978 = vst [vmem:[%s977] sm:$0xff] %v976
  %s979 = smul.u32 6, 3
  %s980 = smul.addr %s979, 8
  %s981 = scalar_lea.vmem [#allocation2], %s980
  %v982 = vld [vmem:[%s981] sm:$0xff]
  %v983 = vld [vmem:[%s981 + $0x8] sm:$0xff]
  %v984 = vld [vmem:[%s981 + $0x10] sm:$0xff]
  %985 = vmatpush.msra.mxu0 %v276
  %986 = vmatpush.msra.mxu0 %v273
  %987 = vmatpush.msra.mxu0 %v270
  %988 = vmatpush.msra.mxu0 %v267
  %989 = vmatpush.msra.mxu0 %v264
  %990 = vmatpush.msra.mxu0 %v261
  %991 = vmatpush.msra.mxu0 %v258
  %992 = vmatpush.msra.mxu0 %v255
  %993 = vmatpush.msra.mxu0 %v252
  %994 = vmatpush.msra.mxu0 %v249
  %995 = vmatpush.msra.mxu0 %v246
  %996 = vmatpush.msra.mxu0 %v243
  %997 = vmatpush.msra.mxu0 %v240
  %998 = vmatpush.msra.mxu0 %v237
  %999 = vmatpush.msra.mxu0 %v234
  %1000 = vmatpush.msra.mxu0 %v231
  %1001 = vmatmul.f32.gmra.mxu0 %v976
  %v1002 = vpop.f32.mrf.mxu0
  %v1003 = vadd.f32 0.0, %v1002
  %1004 = vdwg.mxu0
  %1005 = vmatpush.msra.mxu0 %v277
  %1006 = vmatpush.msra.mxu0 %v274
  %1007 = vmatpush.msra.mxu0 %v271
  %1008 = vmatpush.msra.mxu0 %v268
  %1009 = vmatpush.msra.mxu0 %v265
  %1010 = vmatpush.msra.mxu0 %v262
  %1011 = vmatpush.msra.mxu0 %v259
  %1012 = vmatpush.msra.mxu0 %v256
  %1013 = vmatpush.msra.mxu0 %v253
  %1014 = vmatpush.msra.mxu0 %v250
  %1015 = vmatpush.msra.mxu0 %v247
  %1016 = vmatpush.msra.mxu0 %v244
  %1017 = vmatpush.msra.mxu0 %v241
  %1018 = vmatpush.msra.mxu0 %v238
  %1019 = vmatpush.msra.mxu0 %v235
  %1020 = vmatpush.msra.mxu0 %v232
  %1021 = vmatmul.f32.gmra.mxu0 %v976
  %v1022 = vpop.f32.mrf.mxu0
  %v1023 = vadd.f32 0.0, %v1022
  %1024 = vdwg.mxu0
  %1025 = vmatpush.msra.mxu0 %v278
  %1026 = vmatpush.msra.mxu0 %v275
  %1027 = vmatpush.msra.mxu0 %v272
  %1028 = vmatpush.msra.mxu0 %v269
  %1029 = vmatpush.msra.mxu0 %v266
  %1030 = vmatpush.msra.mxu0 %v263
  %1031 = vmatpush.msra.mxu0 %v260
  %1032 = vmatpush.msra.mxu0 %v257
  %1033 = vmatpush.msra.mxu0 %v254
  %1034 = vmatpush.msra.mxu0 %v251
  %1035 = vmatpush.msra.mxu0 %v248
  %1036 = vmatpush.msra.mxu0 %v245
  %1037 = vmatpush.msra.mxu0 %v242
  %1038 = vmatpush.msra.mxu0 %v239
  %1039 = vmatpush.msra.mxu0 %v236
  %1040 = vmatpush.msra.mxu0 %v233
  %1041 = vmatmul.f32.gmra.mxu0 %v976
  %v1042 = vpop.f32.mrf.mxu0
  %v1043 = vadd.f32 0.0, %v1042
  %1044 = vdwg.mxu0
  %v1045 = vadd.f32 %v982, %v1003
  %v1046 = vxor.u32 %v1045, 2147483648
  %v1047 = vmul.f32 %v1046, 1.442695
  %v1048 = vpow.pop %v1047
  %v1049 = vadd.f32 %v1048, 1.0
  %v1050 = vrcp.pop %v1049
  %v1051 = vmul.f32 %v1049, %v1050
  %v1052 = vsub.f32 1.0, %v1051
  %v1053 = vmul.f32 %v1050, %v1052
  %v1054 = vadd.f32 %v1050, %v1053
  %vm1055 = vweird.f32 %v1049
  %vm1056 = vweird.f32 %v1050
  %vm1057 = vmor %vm1055, %vm1056
  %v1058 = vsel %vm1057, %v1050, %v1054
  %v1059 = vand.u32 2147483647, %v1049
  %vm1060 = vcmp.eq.f32.partialorder %v1059, 8.507059e+37
  %v1061 = vand.u32 %v1049, 2147483648
  %v1062 = vor.u32 1.1754944e-38, %v1061
  %v1063 = vsel %vm1060, %v1062, %v1058
  %v1064 = vmul.f32 1.0, %v1063
  %v1065 = vadd.f32 %v983, %v1023
  %v1066 = vxor.u32 %v1065, 2147483648
  %v1067 = vmul.f32 %v1066, 1.442695
  %v1068 = vpow.pop %v1067
  %v1069 = vadd.f32 %v1068, 1.0
  %v1070 = vrcp.pop %v1069
  %v1071 = vmul.f32 %v1069, %v1070
  %v1072 = vsub.f32 1.0, %v1071
  %v1073 = vmul.f32 %v1070, %v1072
  %v1074 = vadd.f32 %v1070, %v1073
  %vm1075 = vweird.f32 %v1069
  %vm1076 = vweird.f32 %v1070
  %vm1077 = vmor %vm1075, %vm1076
  %v1078 = vsel %vm1077, %v1070, %v1074
  %v1079 = vand.u32 2147483647, %v1069
  %vm1080 = vcmp.eq.f32.partialorder %v1079, 8.507059e+37
  %v1081 = vand.u32 %v1069, 2147483648
  %v1082 = vor.u32 1.1754944e-38, %v1081
  %v1083 = vsel %vm1080, %v1082, %v1078
  %v1084 = vmul.f32 1.0, %v1083
  %v1085 = vadd.f32 %v1043, %v281
  %v1086 = vmul.f32 %v1064, %v1085
  %v1087 = vadd.f32 %v984, %v1086
  %v1088 = vtanh.pop %v1087
  %v1089 = vsub.f32 1.0, %v1084
  %v1090 = vmul.f32 %v1089, %v1088
  %v1091 = vmul.f32 %v1084, %v976
  %v1092 = vadd.f32 %v1090, %v1091
  %s1093 = scalar_lea.vmem [#allocation3], 48
  %1094 = vst [vmem:[%s1093] sm:$0xff] %v1092
  %s1095 = smul.u32 7, 3
  %s1096 = smul.addr %s1095, 8
  %s1097 = scalar_lea.vmem [#allocation2], %s1096
  %v1098 = vld [vmem:[%s1097] sm:$0xff]
  %v1099 = vld [vmem:[%s1097 + $0x8] sm:$0xff]
  %v1100 = vld [vmem:[%s1097 + $0x10] sm:$0xff]
  %1101 = vmatpush.msra.mxu0 %v276
  %1102 = vmatpush.msra.mxu0 %v273
  %1103 = vmatpush.msra.mxu0 %v270
  %1104 = vmatpush.msra.mxu0 %v267
  %1105 = vmatpush.msra.mxu0 %v264
  %1106 = vmatpush.msra.mxu0 %v261
  %1107 = vmatpush.msra.mxu0 %v258
  %1108 = vmatpush.msra.mxu0 %v255
  %1109 = vmatpush.msra.mxu0 %v252
  %1110 = vmatpush.msra.mxu0 %v249
  %1111 = vmatpush.msra.mxu0 %v246
  %1112 = vmatpush.msra.mxu0 %v243
  %1113 = vmatpush.msra.mxu0 %v240
  %1114 = vmatpush.msra.mxu0 %v237
  %1115 = vmatpush.msra.mxu0 %v234
  %1116 = vmatpush.msra.mxu0 %v231
  %1117 = vmatmul.f32.gmra.mxu0 %v1092
  %v1118 = vpop.f32.mrf.mxu0
  %v1119 = vadd.f32 0.0, %v1118
  %1120 = vdwg.mxu0
  %1121 = vmatpush.msra.mxu0 %v277
  %1122 = vmatpush.msra.mxu0 %v274
  %1123 = vmatpush.msra.mxu0 %v271
  %1124 = vmatpush.msra.mxu0 %v268
  %1125 = vmatpush.msra.mxu0 %v265
  %1126 = vmatpush.msra.mxu0 %v262
  %1127 = vmatpush.msra.mxu0 %v259
  %1128 = vmatpush.msra.mxu0 %v256
  %1129 = vmatpush.msra.mxu0 %v253
  %1130 = vmatpush.msra.mxu0 %v250
  %1131 = vmatpush.msra.mxu0 %v247
  %1132 = vmatpush.msra.mxu0 %v244
  %1133 = vmatpush.msra.mxu0 %v241
  %1134 = vmatpush.msra.mxu0 %v238
  %1135 = vmatpush.msra.mxu0 %v235
  %1136 = vmatpush.msra.mxu0 %v232
  %1137 = vmatmul.f32.gmra.mxu0 %v1092
  %v1138 = vpop.f32.mrf.mxu0
  %v1139 = vadd.f32 0.0, %v1138
  %1140 = vdwg.mxu0
  %1141 = vmatpush.msra.mxu0 %v278
  %1142 = vmatpush.msra.mxu0 %v275
  %1143 = vmatpush.msra.mxu0 %v272
  %1144 = vmatpush.msra.mxu0 %v269
  %1145 = vmatpush.msra.mxu0 %v266
  %1146 = vmatpush.msra.mxu0 %v263
  %1147 = vmatpush.msra.mxu0 %v260
  %1148 = vmatpush.msra.mxu0 %v257
  %1149 = vmatpush.msra.mxu0 %v254
  %1150 = vmatpush.msra.mxu0 %v251
  %1151 = vmatpush.msra.mxu0 %v248
  %1152 = vmatpush.msra.mxu0 %v245
  %1153 = vmatpush.msra.mxu0 %v242
  %1154 = vmatpush.msra.mxu0 %v239
  %1155 = vmatpush.msra.mxu0 %v236
  %1156 = vmatpush.msra.mxu0 %v233
  %1157 = vmatmul.f32.gmra.mxu0 %v1092
  %v1158 = vpop.f32.mrf.mxu0
  %v1159 = vadd.f32 0.0, %v1158
  %1160 = vdwg.mxu0
  %v1161 = vadd.f32 %v1098, %v1119
  %v1162 = vxor.u32 %v1161, 2147483648
  %v1163 = vmul.f32 %v1162, 1.442695
  %v1164 = vpow.pop %v1163
  %v1165 = vadd.f32 %v1164, 1.0
  %v1166 = vrcp.pop %v1165
  %v1167 = vmul.f32 %v1165, %v1166
  %v1168 = vsub.f32 1.0, %v1167
  %v1169 = vmul.f32 %v1166, %v1168
  %v1170 = vadd.f32 %v1166, %v1169
  %vm1171 = vweird.f32 %v1165
  %vm1172 = vweird.f32 %v1166
  %vm1173 = vmor %vm1171, %vm1172
  %v1174 = vsel %vm1173, %v1166, %v1170
  %v1175 = vand.u32 2147483647, %v1165
  %vm1176 = vcmp.eq.f32.partialorder %v1175, 8.507059e+37
  %v1177 = vand.u32 %v1165, 2147483648
  %v1178 = vor.u32 1.1754944e-38, %v1177
  %v1179 = vsel %vm1176, %v1178, %v1174
  %v1180 = vmul.f32 1.0, %v1179
  %v1181 = vadd.f32 %v1099, %v1139
  %v1182 = vxor.u32 %v1181, 2147483648
  %v1183 = vmul.f32 %v1182, 1.442695
  %v1184 = vpow.pop %v1183
  %v1185 = vadd.f32 %v1184, 1.0
  %v1186 = vrcp.pop %v1185
  %v1187 = vmul.f32 %v1185, %v1186
  %v1188 = vsub.f32 1.0, %v1187
  %v1189 = vmul.f32 %v1186, %v1188
  %v1190 = vadd.f32 %v1186, %v1189
  %vm1191 = vweird.f32 %v1185
  %vm1192 = vweird.f32 %v1186
  %vm1193 = vmor %vm1191, %vm1192
  %v1194 = vsel %vm1193, %v1186, %v1190
  %v1195 = vand.u32 2147483647, %v1185
  %vm1196 = vcmp.eq.f32.partialorder %v1195, 8.507059e+37
  %v1197 = vand.u32 %v1185, 2147483648
  %v1198 = vor.u32 1.1754944e-38, %v1197
  %v1199 = vsel %vm1196, %v1198, %v1194
  %v1200 = vmul.f32 1.0, %v1199
  %v1201 = vadd.f32 %v1159, %v281
  %v1202 = vmul.f32 %v1180, %v1201
  %v1203 = vadd.f32 %v1100, %v1202
  %v1204 = vtanh.pop %v1203
  %v1205 = vsub.f32 1.0, %v1200
  %v1206 = vmul.f32 %v1205, %v1204
  %v1207 = vmul.f32 %v1200, %v1092
  %v1208 = vadd.f32 %v1206, %v1207
  %s1209 = scalar_lea.vmem [#allocation3], 56
  %1210 = vst [vmem:[%s1209] sm:$0xff] %v1208
  %1211 = vst [vmem:[%s9] sm:$0xff] %v1208
  %v1212 = vld [vmem:[#allocation3] sm:$0xff]
  %v1213 = vld [vmem:[#allocation3 + $0x8] sm:$0xff]
  %v1214 = vld [vmem:[#allocation3 + $0x10] sm:$0xff]
  %v1215 = vld [vmem:[#allocation3 + $0x18] sm:$0xff]
  %v1216 = vld [vmem:[#allocation3 + $0x20] sm:$0xff]
  %v1217 = vld [vmem:[#allocation3 + $0x28] sm:$0xff]
  %v1218 = vld [vmem:[#allocation3 + $0x30] sm:$0xff]
  %v1219 = vld [vmem:[#allocation3 + $0x38] sm:$0xff]
  %v1220 = vld [vmem:[%s6] sm:$0xff]
  %v1221 = vld [vmem:[%s6 + $0x8] sm:$0xff]
  %v1222 = vld [vmem:[%s6 + $0x10] sm:$0xff]
  %v1223 = vld [vmem:[%s6 + $0x18] sm:$0xff]
  %v1224 = vld [vmem:[%s6 + $0x20] sm:$0xff]
  %v1225 = vld [vmem:[%s6 + $0x28] sm:$0xff]
  %v1226 = vld [vmem:[%s6 + $0x30] sm:$0xff]
  %v1227 = vld [vmem:[%s6 + $0x38] sm:$0xff]
  %v1228 = vld [vmem:[%s6 + $0x40] sm:$0xff]
  %v1229 = vld [vmem:[%s6 + $0x48] sm:$0xff]
  %v1230 = vld [vmem:[%s6 + $0x50] sm:$0xff]
  %v1231 = vld [vmem:[%s6 + $0x58] sm:$0xff]
  %v1232 = vld [vmem:[%s6 + $0x60] sm:$0xff]
  %v1233 = vld [vmem:[%s6 + $0x68] sm:$0xff]
  %v1234 = vld [vmem:[%s6 + $0x70] sm:$0xff]
  %v1235 = vld [vmem:[%s6 + $0x78] sm:$0xff]
  %v1236 = vld [vmem:[%s7] sm:$0x1]
  %v1238 = vperm.slane %v1236, 0
  %1240 = vmatpush.msra.mxu0 %v1235
  %1241 = vmatpush.msra.mxu0 %v1234
  %1242 = vmatpush.msra.mxu0 %v1233
  %1243 = vmatpush.msra.mxu0 %v1232
  %1244 = vmatpush.msra.mxu0 %v1231
  %1245 = vmatpush.msra.mxu0 %v1230
  %1246 = vmatpush.msra.mxu0 %v1229
  %1247 = vmatpush.msra.mxu0 %v1228
  %1248 = vmatpush.msra.mxu0 %v1227
  %1249 = vmatpush.msra.mxu0 %v1226
  %1250 = vmatpush.msra.mxu0 %v1225
  %1251 = vmatpush.msra.mxu0 %v1224
  %1252 = vmatpush.msra.mxu0 %v1223
  %1253 = vmatpush.msra.mxu0 %v1222
  %1254 = vmatpush.msra.mxu0 %v1221
  %1255 = vmatpush.msra.mxu0 %v1220
  %1256 = vmatmul.f32.gmra.mxu0 %v1212
  %v1257 = vpop.f32.mrf.mxu0
  %v1258 = vadd.f32 %v1238, %v1257
  %1259 = vmatmul.f32.gmra.mxu0 %v1213
  %v1260 = vpop.f32.mrf.mxu0
  %v1261 = vadd.f32 %v1238, %v1260
  %1262 = vmatmul.f32.gmra.mxu0 %v1214
  %v1263 = vpop.f32.mrf.mxu0
  %v1264 = vadd.f32 %v1238, %v1263
  %1265 = vmatmul.f32.gmra.mxu0 %v1215
  %v1266 = vpop.f32.mrf.mxu0
  %v1267 = vadd.f32 %v1238, %v1266
  %1268 = vmatmul.f32.gmra.mxu0 %v1216
  %v1269 = vpop.f32.mrf.mxu0
  %v1270 = vadd.f32 %v1238, %v1269
  %1271 = vmatmul.f32.gmra.mxu0 %v1217
  %v1272 = vpop.f32.mrf.mxu0
  %v1273 = vadd.f32 %v1238, %v1272
  %1274 = vmatmul.f32.gmra.mxu0 %v1218
  %v1275 = vpop.f32.mrf.mxu0
  %v1276 = vadd.f32 %v1238, %v1275
  %1277 = vmatmul.f32.gmra.mxu0 %v1219
  %v1278 = vpop.f32.mrf.mxu0
  %v1279 = vadd.f32 %v1238, %v1278
  %1280 = vdwg.mxu0
  %1281 = vst [vmem:[%s8] sm:$0xff] %v1258
  %1282 = vst [vmem:[%s8 + $0x8] sm:$0xff] %v1261
  %1283 = vst [vmem:[%s8 + $0x10] sm:$0xff] %v1264
  %1284 = vst [vmem:[%s8 + $0x18] sm:$0xff] %v1267
  %1285 = vst [vmem:[%s8 + $0x20] sm:$0xff] %v1270
  %1286 = vst [vmem:[%s8 + $0x28] sm:$0xff] %v1273
  %1287 = vst [vmem:[%s8 + $0x30] sm:$0xff] %v1276
  %1288 = vst [vmem:[%s8 + $0x38] sm:$0xff] %v1279
  // Predicated region
  $region34: #{decoder_forward.1} parent=0 // pred_check
    _
  $region35: #{decoder_forward.1} parent=0 // pred_check_branch
    %1290 = sbr.rel (0) target = $region37
  $region36: #{decoder_forward.1} parent=0 // pred_region
    _
  $region37: #{decoder_forward.1} parent=0 // pred_fallthru
    _
  // Predicated region
  $region38: #{decoder_forward.1} parent=0 // pred_check
    _
  $region39: #{decoder_forward.1} parent=0 // pred_check_branch
    %1292 = sbr.rel (0) target = $region41
  $region40: #{decoder_forward.1} parent=0 // pred_region
    _
  $region41: #{decoder_forward.1} parent=0 // pred_fallthru
    _
  // Predicated region
  $region42: #{decoder_forward.1} parent=0 // pred_check
    _
  $region43: #{decoder_forward.1} parent=0 // pred_check_branch
    %1294 = sbr.rel (0) target = $region45
  $region44: #{decoder_forward.1} parent=0 // pred_region
    _
  $region45: #{decoder_forward.1} parent=0 // pred_fallthru
    _
  // Predicated region
  $region46: #{decoder_forward.1} parent=0 // pred_check
    _
  $region47: #{decoder_forward.1} parent=0 // pred_check_branch
    %1296 = sbr.rel (0) target = $region49
  $region48: #{decoder_forward.1} parent=0 // pred_region
    _
  $region49: #{decoder_forward.1} parent=0 // pred_fallthru
    _

</llo_original>
